<compile_context>
chip_gen: v7x
topology: tpu7x:2x2x1
jax: 0.10.0
libtpu: 0.0.40
codegen_flags: <defaults>
</compile_context>

<pallas_src>
import jax
import jax.numpy as jnp
from jax.experimental import pallas as pl
from jax.experimental.pallas import tpu as pltpu

LATENT_DIM = 1000
SIGNAL_LENGTH = 1000
HIDDEN1 = 128
HIDDEN2 = 256

# Lane-dense (multiple-of-128) padded sizes for the input / output feature dims.
LATENT_PAD = 1024
SIGNAL_PAD = 1024


def _round_up(x, m):
    return (x + m - 1) // m * m


def _generator_kernel(z_ref, w1_ref, b1_ref, w2_ref, b2_ref, w3_ref, b3_ref,
                      out_ref):
    # Layer 1: Linear(1024 -> 128) + ReLU.  bf16 MXU matmul, f32 accumulate;
    # bias-add and ReLU stay in f32 (VPU) on the accumulator.
    h1 = jnp.dot(z_ref[...], w1_ref[...], preferred_element_type=jnp.float32)
    h1 = jnp.maximum(h1 + b1_ref[...], 0.0)

    # Layer 2: Linear(128 -> 256) + ReLU.
    h2 = jnp.dot(h1.astype(jnp.bfloat16), w2_ref[...],
                 preferred_element_type=jnp.float32)
    h2 = jnp.maximum(h2 + b2_ref[...], 0.0)

    # Layer 3: Linear(256 -> 1024) + Tanh (tanh runs on the otherwise-idle EUP).
    h3 = jnp.dot(h2.astype(jnp.bfloat16), w3_ref[...],
                 preferred_element_type=jnp.float32)
    # Only the final store packs to bf16 (cheap VPU pack; halves output DMA).
    out_ref[...] = jnp.tanh(h3 + b3_ref[...]).astype(out_ref.dtype)


def prepare_params(w1, b1, w2, b2, w3, b3):
    """One-time weight prep: bf16 cast + zero-pad to lane-dense shapes.

    Call this once and reuse the result; doing it per forward pass costs more
    HBM traffic than the kernel's own weight DMA.
    """
    w1_p = jnp.pad(w1.astype(jnp.bfloat16),
                   ((0, LATENT_PAD - LATENT_DIM), (0, 0)))
    w2_b = w2.astype(jnp.bfloat16)
    w3_p = jnp.pad(w3.astype(jnp.bfloat16),
                   ((0, 0), (0, SIGNAL_PAD - SIGNAL_LENGTH)))
    b3_p = jnp.pad(b3, ((0, 0), (0, SIGNAL_PAD - SIGNAL_LENGTH)))
    # Biases stay f32 (added on the f32 accumulator inside the kernel).
    return w1_p, b1, w2_b, b2, w3_p, b3_p


def _choose_batch_tiling(batch):
    # Up to 512 rows/tile, rounded to 16 (bf16 (16,128) sublane packing).
    tile_b = min(512, _round_up(max(batch, 16), 16))
    # Ensure >= 2 grid steps when the batch allows it, so ("parallel",) can
    # shard the batch across both TensorCores on v7x; harmless elsewhere.
    if batch > 16 and batch < 2 * tile_b:
        tile_b = _round_up(pl.cdiv(batch, 2), 16)
    padded_batch = _round_up(batch, tile_b)
    return tile_b, padded_batch


def _padded_call(z, w1_p, b1, w2_b, b2, w3_p, b3_p):
    """Core pallas_call. Returns the lane-dense padded bf16 output
    (padded_batch, SIGNAL_PAD)."""
    batch = z.shape[0]
    tile_b, padded_batch = _choose_batch_tiling(batch)
    grid = (padded_batch // tile_b,)

    # Per-call activation plumbing only (weights are already prepped).
    # NOTE: padded batch rows are zero; their outputs are garbage but are
    # never read back by callers that strip the padding — do not start
    # consuming them in a future refactor.
    z_p = jnp.pad(z.astype(jnp.bfloat16),
                  ((0, padded_batch - batch), (0, LATENT_PAD - LATENT_DIM)))

    const = lambda i: (0, 0)   # weights/biases: same block every step (resident)
    row = lambda i: (i, 0)     # activation/output tiles march over the batch

    return pl.pallas_call(
        _generator_kernel,
        out_shape=jax.ShapeDtypeStruct((padded_batch, SIGNAL_PAD),
                                       jnp.bfloat16),
        grid=grid,
        in_specs=[
            pl.BlockSpec((tile_b, LATENT_PAD), row),      # z (bf16)
            pl.BlockSpec((LATENT_PAD, HIDDEN1), const),   # w1 (bf16)
            pl.BlockSpec((1, HIDDEN1), const),            # b1 (f32)
            pl.BlockSpec((HIDDEN1, HIDDEN2), const),      # w2 (bf16)
            pl.BlockSpec((1, HIDDEN2), const),            # b2 (f32)
            pl.BlockSpec((HIDDEN2, SIGNAL_PAD), const),   # w3 (bf16)
            pl.BlockSpec((1, SIGNAL_PAD), const),         # b3 (f32)
        ],
        out_specs=pl.BlockSpec((tile_b, SIGNAL_PAD), row),
        compiler_params=pltpu.CompilerParams(
            dimension_semantics=("parallel",)),
    )(z_p, w1_p, b1, w2_b, b2, w3_p, b3_p)


@jax.jit
def generator_forward_padded(z, w1_p, b1, w2_b, b2, w3_p, b3_p):
    """Perf-oriented entry point: returns the lane-padded bf16 output
    (padded_batch, 1024); caller fuses/ignores the padding."""
    return _padded_call(z, w1_p, b1, w2_b, b2, w3_p, b3_p)


@jax.jit
def generator_forward(z, w1_p, b1, w2_b, b2, w3_p, b3_p):
    """Semantic parity with the PyTorch module: (batch, 1000) float32."""
    out_p = _padded_call(z, w1_p, b1, w2_b, b2, w3_p, b3_p)
    # Slice + f32 cast fuse into a single pass inside this jit.
    return out_p[:z.shape[0], :SIGNAL_LENGTH].astype(jnp.float32)


def init_params(key):
    """Deterministic init mimicking nn.Linear's default U(-1/sqrt(in), 1/sqrt(in))."""
    keys = jax.random.split(key, 6)

    def linear(kw, kb, fan_in, fan_out):
        bound = 1.0 / jnp.sqrt(jnp.float32(fan_in))
        # stored as (in, out) so the kernel does x @ W
        w = jax.random.uniform(kw, (fan_in, fan_out), jnp.float32, -bound, bound)
        b = jax.random.uniform(kb, (1, fan_out), jnp.float32, -bound, bound)
        return w, b

    w1, b1 = linear(keys[0], keys[1], LATENT_DIM, HIDDEN1)
    w2, b2 = linear(keys[2], keys[3], HIDDEN1, HIDDEN2)
    w3, b3 = linear(keys[4], keys[5], HIDDEN2, SIGNAL_LENGTH)
    return w1, b1, w2, b2, w3, b3


def reference_forward(z, w1, b1, w2, b2, w3, b3):
    h1 = jnp.maximum(z @ w1 + b1, 0.0)
    h2 = jnp.maximum(h1 @ w2 + b2, 0.0)
    return jnp.tanh(h2 @ w3 + b3)


if __name__ == "__main__":
    key = jax.random.PRNGKey(0)
    k_params, k_z = jax.random.split(key)

    params = init_params(k_params)
    prepared = prepare_params(*params)          # one-time weight prep (cached)

    batch = 2
    z = jax.random.normal(k_z, (batch, LATENT_DIM), jnp.float32)

    out = generator_forward(z, *prepared)
    out = jax.block_until_ready(out)

    ref = reference_forward(z, *params)
    assert out.shape == (batch, SIGNAL_LENGTH)
    assert out.dtype == jnp.float32
    # bf16 storage of weights/activations/output -> looser tolerance vs f32 ref.
    assert jnp.allclose(out, ref, atol=3e-2, rtol=3e-2), (
        float(jnp.max(jnp.abs(out - ref))))

    print("KERNEL_OK")
</pallas_src>

<mosaic_0001>
module attributes {stable_mosaic.version = 11 : i64} {
  func.func @_generator_kernel(%arg0: i32, %arg1: memref<16x1024xbf16, #tpu.memory_space<vmem>>, %arg2: memref<1024x128xbf16, #tpu.memory_space<vmem>>, %arg3: memref<1x128xf32, #tpu.memory_space<vmem>>, %arg4: memref<128x256xbf16, #tpu.memory_space<vmem>>, %arg5: memref<1x256xf32, #tpu.memory_space<vmem>>, %arg6: memref<256x1024xbf16, #tpu.memory_space<vmem>>, %arg7: memref<1x1024xf32, #tpu.memory_space<vmem>>, %arg8: memref<16x1024xbf16, #tpu.memory_space<vmem>>) attributes {dimension_semantics = [#tpu.dimension_semantics<parallel>], iteration_bounds = array<i64: 1>, scalar_prefetch = 0 : i64, scratch_operands = 0 : i64, tpu.core_type = #tpu.core_type<tc>, window_params = [{transform_indices = @transform_0, window_bounds = array<i64: 16, 1024>}, {pipeline_mode = #tpu.pipeline_mode<synchronous>, transform_indices = @transform_1, window_bounds = array<i64: 1024, 128>}, {pipeline_mode = #tpu.pipeline_mode<synchronous>, transform_indices = @transform_2, window_bounds = array<i64: 1, 128>}, {pipeline_mode = #tpu.pipeline_mode<synchronous>, transform_indices = @transform_3, window_bounds = array<i64: 128, 256>}, {pipeline_mode = #tpu.pipeline_mode<synchronous>, transform_indices = @transform_4, window_bounds = array<i64: 1, 256>}, {pipeline_mode = #tpu.pipeline_mode<synchronous>, transform_indices = @transform_5, window_bounds = array<i64: 256, 1024>}, {pipeline_mode = #tpu.pipeline_mode<synchronous>, transform_indices = @transform_6, window_bounds = array<i64: 1, 1024>}, {transform_indices = @transform_7, window_bounds = array<i64: 16, 1024>}]} {
    %c0 = arith.constant 0 : index
    %c0_0 = arith.constant 0 : index
    %0 = vector.load %arg1[%c0, %c0_0] : memref<16x1024xbf16, #tpu.memory_space<vmem>>, vector<16x1024xbf16>
    %c0_1 = arith.constant 0 : index
    %c0_2 = arith.constant 0 : index
    %1 = vector.load %arg2[%c0_1, %c0_2] : memref<1024x128xbf16, #tpu.memory_space<vmem>>, vector<1024x128xbf16>
    %cst = arith.constant dense<0.000000e+00> : vector<16x128xf32>
    %2 = tpu.matmul %0, %1, %cst {dimension_numbers = #tpu.dot_dimension_numbers<[1], [0], [0], [1], [0, 0, 1, 1], [], []>} : vector<16x1024xbf16>, vector<1024x128xbf16>, vector<16x128xf32> -> vector<16x128xf32>
    %c0_3 = arith.constant 0 : index
    %c0_4 = arith.constant 0 : index
    %3 = vector.load %arg3[%c0_3, %c0_4] : memref<1x128xf32, #tpu.memory_space<vmem>>, vector<1x128xf32>
    %4 = vector.broadcast %3 : vector<1x128xf32> to vector<16x128xf32>
    %5 = arith.addf %2, %4 : vector<16x128xf32>
    %cst_5 = arith.constant 0.000000e+00 : f32
    %6 = vector.broadcast %cst_5 : f32 to vector<16x128xf32>
    %7 = arith.maximumf %5, %6 : vector<16x128xf32>
    %8 = arith.truncf %7 : vector<16x128xf32> to vector<16x128xbf16>
    %c0_6 = arith.constant 0 : index
    %c0_7 = arith.constant 0 : index
    %9 = vector.load %arg4[%c0_6, %c0_7] : memref<128x256xbf16, #tpu.memory_space<vmem>>, vector<128x256xbf16>
    %cst_8 = arith.constant dense<0.000000e+00> : vector<16x256xf32>
    %10 = tpu.matmul %8, %9, %cst_8 {dimension_numbers = #tpu.dot_dimension_numbers<[1], [0], [0], [1], [0, 0, 1, 1], [], []>} : vector<16x128xbf16>, vector<128x256xbf16>, vector<16x256xf32> -> vector<16x256xf32>
    %c0_9 = arith.constant 0 : index
    %c0_10 = arith.constant 0 : index
    %11 = vector.load %arg5[%c0_9, %c0_10] : memref<1x256xf32, #tpu.memory_space<vmem>>, vector<1x256xf32>
    %12 = vector.broadcast %11 : vector<1x256xf32> to vector<16x256xf32>
    %13 = arith.addf %10, %12 : vector<16x256xf32>
    %cst_11 = arith.constant 0.000000e+00 : f32
    %14 = vector.broadcast %cst_11 : f32 to vector<16x256xf32>
    %15 = arith.maximumf %13, %14 : vector<16x256xf32>
    %16 = arith.truncf %15 : vector<16x256xf32> to vector<16x256xbf16>
    %c0_12 = arith.constant 0 : index
    %c0_13 = arith.constant 0 : index
    %17 = vector.load %arg6[%c0_12, %c0_13] : memref<256x1024xbf16, #tpu.memory_space<vmem>>, vector<256x1024xbf16>
    %cst_14 = arith.constant dense<0.000000e+00> : vector<16x1024xf32>
    %18 = tpu.matmul %16, %17, %cst_14 {dimension_numbers = #tpu.dot_dimension_numbers<[1], [0], [0], [1], [0, 0, 1, 1], [], []>} : vector<16x256xbf16>, vector<256x1024xbf16>, vector<16x1024xf32> -> vector<16x1024xf32>
    %c0_15 = arith.constant 0 : index
    %c0_16 = arith.constant 0 : index
    %19 = vector.load %arg7[%c0_15, %c0_16] : memref<1x1024xf32, #tpu.memory_space<vmem>>, vector<1x1024xf32>
    %20 = vector.broadcast %19 : vector<1x1024xf32> to vector<16x1024xf32>
    %21 = arith.addf %18, %20 : vector<16x1024xf32>
    %22 = math.tanh %21 : vector<16x1024xf32>
    %23 = arith.truncf %22 : vector<16x1024xf32> to vector<16x1024xbf16>
    %c0_17 = arith.constant 0 : index
    %c0_18 = arith.constant 0 : index
    %24 = vector.load %arg8[%c0_17, %c0_18] : memref<16x1024xbf16, #tpu.memory_space<vmem>>, vector<16x1024xbf16>
    tpu.vector_store %arg8[%c0_17, %c0_18], %23 {strides = array<i32>} : memref<16x1024xbf16, #tpu.memory_space<vmem>>, vector<16x1024xbf16>,
    return
  }
  func.func @transform_0(%arg0: i32) -> (i32, i32) {
    %c0_i32 = arith.constant 0 : i32
    %c0_i32_0 = arith.constant 0 : i32
    return %arg0, %c0_i32 : i32, i32
  }
  func.func @transform_1(%arg0: i32) -> (i32, i32) {
    %c0_i32 = arith.constant 0 : i32
    %c0_i32_0 = arith.constant 0 : i32
    %c0_i32_1 = arith.constant 0 : i32
    return %c0_i32, %c0_i32_0 : i32, i32
  }
  func.func @transform_2(%arg0: i32) -> (i32, i32) {
    %c0_i32 = arith.constant 0 : i32
    %c0_i32_0 = arith.constant 0 : i32
    %c0_i32_1 = arith.constant 0 : i32
    return %c0_i32, %c0_i32_0 : i32, i32
  }
  func.func @transform_3(%arg0: i32) -> (i32, i32) {
    %c0_i32 = arith.constant 0 : i32
    %c0_i32_0 = arith.constant 0 : i32
    %c0_i32_1 = arith.constant 0 : i32
    return %c0_i32, %c0_i32_0 : i32, i32
  }
  func.func @transform_4(%arg0: i32) -> (i32, i32) {
    %c0_i32 = arith.constant 0 : i32
    %c0_i32_0 = arith.constant 0 : i32
    %c0_i32_1 = arith.constant 0 : i32
    return %c0_i32, %c0_i32_0 : i32, i32
  }
  func.func @transform_5(%arg0: i32) -> (i32, i32) {
    %c0_i32 = arith.constant 0 : i32
    %c0_i32_0 = arith.constant 0 : i32
    %c0_i32_1 = arith.constant 0 : i32
    return %c0_i32, %c0_i32_0 : i32, i32
  }
  func.func @transform_6(%arg0: i32) -> (i32, i32) {
    %c0_i32 = arith.constant 0 : i32
    %c0_i32_0 = arith.constant 0 : i32
    %c0_i32_1 = arith.constant 0 : i32
    return %c0_i32, %c0_i32_0 : i32, i32
  }
  func.func @transform_7(%arg0: i32) -> (i32, i32) {
    %c0_i32 = arith.constant 0 : i32
    %c0_i32_0 = arith.constant 0 : i32
    return %arg0, %c0_i32 : i32, i32
  }
}

</mosaic_0001>

<llo_original>
// kernel: generator_forward.1
$region0: #{generator_forward.1}
  #allocation0 [shape = 'u32[]', space=smem, size = 0x4, offset = 0x4, fixed_abs, tag = 'smem constant byte address 0x4 - core index']
  #allocation1 [shape = 'u32[144,128]{1,0:T(1,128)}', space=vmem, size = 0x12000, scoped, tag = 'internal scratch']
  %s0 = inlined_call_operand.vmem [shape: bf16[16,1024], index: 0, kind: input, shape index: {}]
  %s1 = inlined_call_operand.hbm [shape: bf16[1024,128], index: 1, kind: input, shape index: {}]
  %s2 = inlined_call_operand.vmem [shape: f32[1,128], index: 2, kind: input, shape index: {}]
  %s3 = inlined_call_operand.hbm [shape: bf16[128,256], index: 3, kind: input, shape index: {}]
  %s4 = inlined_call_operand.vmem [shape: f32[1,256], index: 4, kind: input, shape index: {}]
  %s5 = inlined_call_operand.hbm [shape: bf16[256,1024], index: 5, kind: input, shape index: {}]
  %s6 = inlined_call_operand.vmem [shape: f32[1,1024], index: 6, kind: input, shape index: {}]
  %s7 = inlined_call_operand.vmem [shape: bf16[16,1024], index: 7, kind: output, shape index: {}]
  %s8 = sld [smem:[#allocation0]]
  $region50: #{generator_forward.1} parent=0
    _
  %s10 = ssub.s32 1, %s8
  %s11 = scalar_select 0, %s10, %s8
  $region1: #{generator_forward.1} parent=0
    #allocation2 [shape = 'u8[262144]{0}', space=vmem, size = 0x40000, scoped, tag = 'input window, operand 1, single buffered']
    #allocation3 [shape = 's32[1]{0}', space=sflag, size = 0x4, scoped, tag = 'scoped memory for generator_forward.1']
    #allocation4 [shape = 'u8[65536]{0}', space=vmem, size = 0x10000, scoped, tag = 'input window, operand 3, single buffered']
    #allocation5 [shape = 's32[1]{0}', space=sflag, size = 0x4, scoped, tag = 'scoped memory for generator_forward.1']
    #allocation6 [shape = 'u8[524288]{0}', space=vmem, size = 0x80000, scoped, tag = 'input window, operand 5, single buffered']
    %12 = vsyncpa [#allocation3], 0
    %13 = vsyncpa [#allocation5], 0
    // Predicated region
    $region2: #{generator_forward.1} parent=1 // pred_check
      _
    $region3: #{generator_forward.1} parent=1 // pred_check_branch
      %15 = sbr.rel (0) target = $region5
    $region4: #{generator_forward.1} parent=1 // pred_region
      _
    $region5: #{generator_forward.1} parent=1 // pred_fallthru
      _
    // Predicated region
    $region6: #{generator_forward.1} parent=1 // pred_check
      _
    $region7: #{generator_forward.1} parent=1 // pred_check_branch
      %17 = sbr.rel (0) target = $region9
    $region8: #{generator_forward.1} parent=1 // pred_region
      %s19 = ssub.s32 8192, 8192
      %20 = vsyncadd [#allocation3], %s19
      %s21 = sshll.u32 [#allocation2], 4
      %s22 = int_to_ptr.vmem [resolvable:$true] %s21
      %27 = dma.hbm_to_vmem [thread:$0]  %s1, 8192, %s22, [#allocation3], 64, 64, 4
    $region9: #{generator_forward.1} parent=1 // pred_fallthru
      _
    // Predicated region
    $region10: #{generator_forward.1} parent=1 // pred_check
      _
    $region11: #{generator_forward.1} parent=1 // pred_check_branch
      %29 = sbr.rel (0) target = $region13
    $region12: #{generator_forward.1} parent=1 // pred_region
      _
    $region13: #{generator_forward.1} parent=1 // pred_fallthru
      _
    // Predicated region
    $region14: #{generator_forward.1} parent=1 // pred_check
      _
    $region15: #{generator_forward.1} parent=1 // pred_check_branch
      %31 = sbr.rel (0) target = $region17
    $region16: #{generator_forward.1} parent=1 // pred_region
      %s33 = ssub.s32 2048, 2048
      %34 = vsyncadd [#allocation5], %s33
      %s35 = sshll.u32 [#allocation4], 4
      %s36 = int_to_ptr.vmem [resolvable:$true] %s35
      %41 = dma.hbm_to_vmem [thread:$0]  %s3, 2048, %s36, [#allocation5], 128, 128, 8
    $region17: #{generator_forward.1} parent=1 // pred_fallthru
      _
    // Predicated region
    $region18: #{generator_forward.1} parent=1 // pred_check
      _
    $region19: #{generator_forward.1} parent=1 // pred_check_branch
      %43 = sbr.rel (0) target = $region21
    $region20: #{generator_forward.1} parent=1 // pred_region
      _
    $region21: #{generator_forward.1} parent=1 // pred_fallthru
      _
    // Predicated region
    $region22: #{generator_forward.1} parent=1 // pred_check
      _
    $region23: #{generator_forward.1} parent=1 // pred_check_branch
      %45 = sbr.rel (0) target = $region25
    $region24: #{generator_forward.1} parent=1 // pred_region
      %s47 = ssub.s32 16384, 16384
      %48 = vsyncadd [#allocation5], %s47
      %s49 = sshll.u32 [#allocation6], 4
      %s50 = int_to_ptr.vmem [resolvable:$true] %s49
      %55 = dma.hbm_to_vmem [thread:$0]  %s5, 16384, %s50, [#allocation5], 512, 512, 32
    $region25: #{generator_forward.1} parent=1 // pred_fallthru
      _
    // Predicated region
    $region26: #{generator_forward.1} parent=1 // pred_check
      _
    $region27: #{generator_forward.1} parent=1 // pred_check_branch
      %57 = sbr.rel (0) target = $region29
    $region28: #{generator_forward.1} parent=1 // pred_region
      _
    $region29: #{generator_forward.1} parent=1 // pred_fallthru
      _
    // Predicated region
    $region30: #{generator_forward.1} parent=1 // pred_check
      _
    $region31: #{generator_forward.1} parent=1 // pred_check_branch
      %59 = sbr.rel (0) target = $region33
    $region32: #{generator_forward.1} parent=1 // pred_region
      %60 = dma.done [#allocation3], 8192
    $region33: #{generator_forward.1} parent=1 // pred_fallthru
      _
    // Predicated region
    $region34: #{generator_forward.1} parent=1 // pred_check
      _
    $region35: #{generator_forward.1} parent=1 // pred_check_branch
      %62 = sbr.rel (0) target = $region37
    $region36: #{generator_forward.1} parent=1 // pred_region
      %63 = dma.done [#allocation5], 2048
    $region37: #{generator_forward.1} parent=1 // pred_fallthru
      _
    // Predicated region
    $region38: #{generator_forward.1} parent=1 // pred_check
      _
    $region39: #{generator_forward.1} parent=1 // pred_check_branch
      %65 = sbr.rel (0) target = $region41
    $region40: #{generator_forward.1} parent=1 // pred_region
      %66 = dma.done [#allocation5], 16384
    $region41: #{generator_forward.1} parent=1 // pred_fallthru
      _
    %v68 = vld [vmem:[%s0] sm:$0xff]
    %v69 = vld [vmem:[%s0 + $0x8] sm:$0xff]
    %v70 = vld [vmem:[%s0 + $0x10] sm:$0xff]
    %v71 = vld [vmem:[%s0 + $0x18] sm:$0xff]
    %v72 = vld [vmem:[%s0 + $0x20] sm:$0xff]
    %v73 = vld [vmem:[%s0 + $0x28] sm:$0xff]
    %v74 = vld [vmem:[%s0 + $0x30] sm:$0xff]
    %v75 = vld [vmem:[%s0 + $0x38] sm:$0xff]
    %v76 = vld [vmem:[#allocation2] sm:$0xf]
    %v77 = vld [vmem:[#allocation2 + $0x4] sm:$0xf]
    %v78 = vld [vmem:[#allocation2 + $0x8] sm:$0xf]
    %v79 = vld [vmem:[#allocation2 + $0xc] sm:$0xf]
    %v80 = vld [vmem:[#allocation2 + $0x10] sm:$0xf]
    %v81 = vld [vmem:[#allocation2 + $0x14] sm:$0xf]
    %v82 = vld [vmem:[#allocation2 + $0x18] sm:$0xf]
    %v83 = vld [vmem:[#allocation2 + $0x1c] sm:$0xf]
    %v84 = vld [vmem:[#allocation2 + $0x20] sm:$0xf]
    %v85 = vld [vmem:[#allocation2 + $0x24] sm:$0xf]
    %v86 = vld [vmem:[#allocation2 + $0x28] sm:$0xf]
    %v87 = vld [vmem:[#allocation2 + $0x2c] sm:$0xf]
    %v88 = vld [vmem:[#allocation2 + $0x30] sm:$0xf]
    %v89 = vld [vmem:[#allocation2 + $0x34] sm:$0xf]
    %v90 = vld [vmem:[#allocation2 + $0x38] sm:$0xf]
    %v91 = vld [vmem:[#allocation2 + $0x3c] sm:$0xf]
    %v92 = vld [vmem:[#allocation2 + $0x40] sm:$0xf]
    %v93 = vld [vmem:[#allocation2 + $0x44] sm:$0xf]
    %v94 = vld [vmem:[#allocation2 + $0x48] sm:$0xf]
    %v95 = vld [vmem:[#allocation2 + $0x4c] sm:$0xf]
    %v96 = vld [vmem:[#allocation2 + $0x50] sm:$0xf]
    %v97 = vld [vmem:[#allocation2 + $0x54] sm:$0xf]
    %v98 = vld [vmem:[#allocation2 + $0x58] sm:$0xf]
    %v99 = vld [vmem:[#allocation2 + $0x5c] sm:$0xf]
    %v100 = vld [vmem:[#allocation2 + $0x60] sm:$0xf]
    %v101 = vld [vmem:[#allocation2 + $0x64] sm:$0xf]
    %v102 = vld [vmem:[#allocation2 + $0x68] sm:$0xf]
    %v103 = vld [vmem:[#allocation2 + $0x6c] sm:$0xf]
    %v104 = vld [vmem:[#allocation2 + $0x70] sm:$0xf]
    %v105 = vld [vmem:[#allocation2 + $0x74] sm:$0xf]
    %v106 = vld [vmem:[#allocation2 + $0x78] sm:$0xf]
    %v107 = vld [vmem:[#allocation2 + $0x7c] sm:$0xf]
    %v108 = vld [vmem:[#allocation2 + $0x80] sm:$0xf]
    %v109 = vld [vmem:[#allocation2 + $0x84] sm:$0xf]
    %v110 = vld [vmem:[#allocation2 + $0x88] sm:$0xf]
    %v111 = vld [vmem:[#allocation2 + $0x8c] sm:$0xf]
    %v112 = vld [vmem:[#allocation2 + $0x90] sm:$0xf]
    %v113 = vld [vmem:[#allocation2 + $0x94] sm:$0xf]
    %v114 = vld [vmem:[#allocation2 + $0x98] sm:$0xf]
    %v115 = vld [vmem:[#allocation2 + $0x9c] sm:$0xf]
    %v116 = vld [vmem:[#allocation2 + $0xa0] sm:$0xf]
    %v117 = vld [vmem:[#allocation2 + $0xa4] sm:$0xf]
    %v118 = vld [vmem:[#allocation2 + $0xa8] sm:$0xf]
    %v119 = vld [vmem:[#allocation2 + $0xac] sm:$0xf]
    %v120 = vld [vmem:[#allocation2 + $0xb0] sm:$0xf]
    %v121 = vld [vmem:[#allocation2 + $0xb4] sm:$0xf]
    %v122 = vld [vmem:[#allocation2 + $0xb8] sm:$0xf]
    %v123 = vld [vmem:[#allocation2 + $0xbc] sm:$0xf]
    %v124 = vld [vmem:[#allocation2 + $0xc0] sm:$0xf]
    %v125 = vld [vmem:[#allocation2 + $0xc4] sm:$0xf]
    %v126 = vld [vmem:[#allocation2 + $0xc8] sm:$0xf]
    %v127 = vld [vmem:[#allocation2 + $0xcc] sm:$0xf]
    %v128 = vld [vmem:[#allocation2 + $0xd0] sm:$0xf]
    %v129 = vld [vmem:[#allocation2 + $0xd4] sm:$0xf]
    %v130 = vld [vmem:[#allocation2 + $0xd8] sm:$0xf]
    %v131 = vld [vmem:[#allocation2 + $0xdc] sm:$0xf]
    %v132 = vld [vmem:[#allocation2 + $0xe0] sm:$0xf]
    %v133 = vld [vmem:[#allocation2 + $0xe4] sm:$0xf]
    %v134 = vld [vmem:[#allocation2 + $0xe8] sm:$0xf]
    %v135 = vld [vmem:[#allocation2 + $0xec] sm:$0xf]
    %v136 = vld [vmem:[#allocation2 + $0xf0] sm:$0xf]
    %v137 = vld [vmem:[#allocation2 + $0xf4] sm:$0xf]
    %v138 = vld [vmem:[#allocation2 + $0xf8] sm:$0xf]
    %v139 = vld [vmem:[#allocation2 + $0xfc] sm:$0xf]
    %v140 = vld [vmem:[#allocation2 + $0x100] sm:$0xf]
    %v141 = vld [vmem:[#allocation2 + $0x104] sm:$0xf]
    %v142 = vld [vmem:[#allocation2 + $0x108] sm:$0xf]
    %v143 = vld [vmem:[#allocation2 + $0x10c] sm:$0xf]
    %v144 = vld [vmem:[#allocation2 + $0x110] sm:$0xf]
    %v145 = vld [vmem:[#allocation2 + $0x114] sm:$0xf]
    %v146 = vld [vmem:[#allocation2 + $0x118] sm:$0xf]
    %v147 = vld [vmem:[#allocation2 + $0x11c] sm:$0xf]
    %v148 = vld [vmem:[#allocation2 + $0x120] sm:$0xf]
    %v149 = vld [vmem:[#allocation2 + $0x124] sm:$0xf]
    %v150 = vld [vmem:[#allocation2 + $0x128] sm:$0xf]
    %v151 = vld [vmem:[#allocation2 + $0x12c] sm:$0xf]
    %v152 = vld [vmem:[#allocation2 + $0x130] sm:$0xf]
    %v153 = vld [vmem:[#allocation2 + $0x134] sm:$0xf]
    %v154 = vld [vmem:[#allocation2 + $0x138] sm:$0xf]
    %v155 = vld [vmem:[#allocation2 + $0x13c] sm:$0xf]
    %v156 = vld [vmem:[#allocation2 + $0x140] sm:$0xf]
    %v157 = vld [vmem:[#allocation2 + $0x144] sm:$0xf]
    %v158 = vld [vmem:[#allocation2 + $0x148] sm:$0xf]
    %v159 = vld [vmem:[#allocation2 + $0x14c] sm:$0xf]
    %v160 = vld [vmem:[#allocation2 + $0x150] sm:$0xf]
    %v161 = vld [vmem:[#allocation2 + $0x154] sm:$0xf]
    %v162 = vld [vmem:[#allocation2 + $0x158] sm:$0xf]
    %v163 = vld [vmem:[#allocation2 + $0x15c] sm:$0xf]
    %v164 = vld [vmem:[#allocation2 + $0x160] sm:$0xf]
    %v165 = vld [vmem:[#allocation2 + $0x164] sm:$0xf]
    %v166 = vld [vmem:[#allocation2 + $0x168] sm:$0xf]
    %v167 = vld [vmem:[#allocation2 + $0x16c] sm:$0xf]
    %v168 = vld [vmem:[#allocation2 + $0x170] sm:$0xf]
    %v169 = vld [vmem:[#allocation2 + $0x174] sm:$0xf]
    %v170 = vld [vmem:[#allocation2 + $0x178] sm:$0xf]
    %v171 = vld [vmem:[#allocation2 + $0x17c] sm:$0xf]
    %v172 = vld [vmem:[#allocation2 + $0x180] sm:$0xf]
    %v173 = vld [vmem:[#allocation2 + $0x184] sm:$0xf]
    %v174 = vld [vmem:[#allocation2 + $0x188] sm:$0xf]
    %v175 = vld [vmem:[#allocation2 + $0x18c] sm:$0xf]
    %v176 = vld [vmem:[#allocation2 + $0x190] sm:$0xf]
    %v177 = vld [vmem:[#allocation2 + $0x194] sm:$0xf]
    %v178 = vld [vmem:[#allocation2 + $0x198] sm:$0xf]
    %v179 = vld [vmem:[#allocation2 + $0x19c] sm:$0xf]
    %v180 = vld [vmem:[#allocation2 + $0x1a0] sm:$0xf]
    %v181 = vld [vmem:[#allocation2 + $0x1a4] sm:$0xf]
    %v182 = vld [vmem:[#allocation2 + $0x1a8] sm:$0xf]
    %v183 = vld [vmem:[#allocation2 + $0x1ac] sm:$0xf]
    %v184 = vld [vmem:[#allocation2 + $0x1b0] sm:$0xf]
    %v185 = vld [vmem:[#allocation2 + $0x1b4] sm:$0xf]
    %v186 = vld [vmem:[#allocation2 + $0x1b8] sm:$0xf]
    %v187 = vld [vmem:[#allocation2 + $0x1bc] sm:$0xf]
    %v188 = vld [vmem:[#allocation2 + $0x1c0] sm:$0xf]
    %v189 = vld [vmem:[#allocation2 + $0x1c4] sm:$0xf]
    %v190 = vld [vmem:[#allocation2 + $0x1c8] sm:$0xf]
    %v191 = vld [vmem:[#allocation2 + $0x1cc] sm:$0xf]
    %v192 = vld [vmem:[#allocation2 + $0x1d0] sm:$0xf]
    %v193 = vld [vmem:[#allocation2 + $0x1d4] sm:$0xf]
    %v194 = vld [vmem:[#allocation2 + $0x1d8] sm:$0xf]
    %v195 = vld [vmem:[#allocation2 + $0x1dc] sm:$0xf]
    %v196 = vld [vmem:[#allocation2 + $0x1e0] sm:$0xf]
    %v197 = vld [vmem:[#allocation2 + $0x1e4] sm:$0xf]
    %v198 = vld [vmem:[#allocation2 + $0x1e8] sm:$0xf]
    %v199 = vld [vmem:[#allocation2 + $0x1ec] sm:$0xf]
    %v200 = vld [vmem:[#allocation2 + $0x1f0] sm:$0xf]
    %v201 = vld [vmem:[#allocation2 + $0x1f4] sm:$0xf]
    %v202 = vld [vmem:[#allocation2 + $0x1f8] sm:$0xf]
    %v203 = vld [vmem:[#allocation2 + $0x1fc] sm:$0xf]
    %v204 = vld [vmem:[%s2] sm:$0x1]
    %v206 = vlaneseq
    %v207 = vshrl.u32 %v206, 7
    %v208 = vsub.s32 0, %v207
    %v209 = vrot.slane %v204, %v208
    %v219 = vunpack.c.l.b16 %v68
    %v220 = vunpack.c.h.b16 %v68
    %v221 = vunpack.c.l.b16 %v69
    %v222 = vunpack.c.h.b16 %v69
    %v223 = vunpack.c.l.b16 %v70
    %v224 = vunpack.c.h.b16 %v70
    %v225 = vunpack.c.l.b16 %v71
    %v226 = vunpack.c.h.b16 %v71
    %v227 = vunpack.c.l.b16 %v72
    %v228 = vunpack.c.h.b16 %v72
    %v229 = vunpack.c.l.b16 %v73
    %v230 = vunpack.c.h.b16 %v73
    %v231 = vunpack.c.l.b16 %v74
    %v232 = vunpack.c.h.b16 %v74
    %v233 = vunpack.c.l.b16 %v75
    %v234 = vunpack.c.h.b16 %v75
    %v235 = vpack.c.b16 %v227, %v219
    %v236 = vpack.c.b16 %v228, %v220
    %v237 = vpack.c.b16 %v229, %v221
    %v238 = vpack.c.b16 %v230, %v222
    %v239 = vpack.c.b16 %v231, %v223
    %v240 = vpack.c.b16 %v232, %v224
    %v241 = vpack.c.b16 %v233, %v225
    %v242 = vpack.c.b16 %v234, %v226
    %v379 = vunpack.c.l.b16 %v76
    %v380 = vunpack.c.l.b16 %v77
    %v381 = vunpack.c.l.b16 %v78
    %v382 = vunpack.c.l.b16 %v79
    %v383 = vunpack.c.l.b16 %v80
    %v384 = vunpack.c.l.b16 %v81
    %v385 = vunpack.c.l.b16 %v82
    %v386 = vunpack.c.l.b16 %v83
    %v387 = vunpack.c.l.b16 %v84
    %v388 = vunpack.c.l.b16 %v85
    %v389 = vunpack.c.l.b16 %v86
    %v390 = vunpack.c.l.b16 %v87
    %v391 = vunpack.c.l.b16 %v88
    %v392 = vunpack.c.l.b16 %v89
    %v393 = vunpack.c.l.b16 %v90
    %v394 = vunpack.c.l.b16 %v91
    %v395 = vunpack.c.l.b16 %v92
    %v396 = vunpack.c.l.b16 %v93
    %v397 = vunpack.c.l.b16 %v94
    %v398 = vunpack.c.l.b16 %v95
    %v399 = vunpack.c.l.b16 %v96
    %v400 = vunpack.c.l.b16 %v97
    %v401 = vunpack.c.l.b16 %v98
    %v402 = vunpack.c.l.b16 %v99
    %v403 = vunpack.c.l.b16 %v100
    %v404 = vunpack.c.l.b16 %v101
    %v405 = vunpack.c.l.b16 %v102
    %v406 = vunpack.c.l.b16 %v103
    %v407 = vunpack.c.l.b16 %v104
    %v408 = vunpack.c.l.b16 %v105
    %v409 = vunpack.c.l.b16 %v106
    %v410 = vunpack.c.l.b16 %v107
    %v411 = vunpack.c.l.b16 %v108
    %v412 = vunpack.c.l.b16 %v109
    %v413 = vunpack.c.l.b16 %v110
    %v414 = vunpack.c.l.b16 %v111
    %v415 = vunpack.c.l.b16 %v112
    %v416 = vunpack.c.l.b16 %v113
    %v417 = vunpack.c.l.b16 %v114
    %v418 = vunpack.c.l.b16 %v115
    %v419 = vunpack.c.l.b16 %v116
    %v420 = vunpack.c.l.b16 %v117
    %v421 = vunpack.c.l.b16 %v118
    %v422 = vunpack.c.l.b16 %v119
    %v423 = vunpack.c.l.b16 %v120
    %v424 = vunpack.c.l.b16 %v121
    %v425 = vunpack.c.l.b16 %v122
    %v426 = vunpack.c.l.b16 %v123
    %v427 = vunpack.c.l.b16 %v124
    %v428 = vunpack.c.l.b16 %v125
    %v429 = vunpack.c.l.b16 %v126
    %v430 = vunpack.c.l.b16 %v127
    %v431 = vunpack.c.l.b16 %v128
    %v432 = vunpack.c.l.b16 %v129
    %v433 = vunpack.c.l.b16 %v130
    %v434 = vunpack.c.l.b16 %v131
    %v435 = vunpack.c.l.b16 %v132
    %v436 = vunpack.c.l.b16 %v133
    %v437 = vunpack.c.l.b16 %v134
    %v438 = vunpack.c.l.b16 %v135
    %v439 = vunpack.c.l.b16 %v136
    %v440 = vunpack.c.l.b16 %v137
    %v441 = vunpack.c.l.b16 %v138
    %v442 = vunpack.c.l.b16 %v139
    %v443 = vunpack.c.l.b16 %v140
    %v444 = vunpack.c.l.b16 %v141
    %v445 = vunpack.c.l.b16 %v142
    %v446 = vunpack.c.l.b16 %v143
    %v447 = vunpack.c.l.b16 %v144
    %v448 = vunpack.c.l.b16 %v145
    %v449 = vunpack.c.l.b16 %v146
    %v450 = vunpack.c.l.b16 %v147
    %v451 = vunpack.c.l.b16 %v148
    %v452 = vunpack.c.l.b16 %v149
    %v453 = vunpack.c.l.b16 %v150
    %v454 = vunpack.c.l.b16 %v151
    %v455 = vunpack.c.l.b16 %v152
    %v456 = vunpack.c.l.b16 %v153
    %v457 = vunpack.c.l.b16 %v154
    %v458 = vunpack.c.l.b16 %v155
    %v459 = vunpack.c.l.b16 %v156
    %v460 = vunpack.c.l.b16 %v157
    %v461 = vunpack.c.l.b16 %v158
    %v462 = vunpack.c.l.b16 %v159
    %v463 = vunpack.c.l.b16 %v160
    %v464 = vunpack.c.l.b16 %v161
    %v465 = vunpack.c.l.b16 %v162
    %v466 = vunpack.c.l.b16 %v163
    %v467 = vunpack.c.l.b16 %v164
    %v468 = vunpack.c.l.b16 %v165
    %v469 = vunpack.c.l.b16 %v166
    %v470 = vunpack.c.l.b16 %v167
    %v471 = vunpack.c.l.b16 %v168
    %v472 = vunpack.c.l.b16 %v169
    %v473 = vunpack.c.l.b16 %v170
    %v474 = vunpack.c.l.b16 %v171
    %v475 = vunpack.c.l.b16 %v172
    %v476 = vunpack.c.l.b16 %v173
    %v477 = vunpack.c.l.b16 %v174
    %v478 = vunpack.c.l.b16 %v175
    %v479 = vunpack.c.l.b16 %v176
    %v480 = vunpack.c.l.b16 %v177
    %v481 = vunpack.c.l.b16 %v178
    %v482 = vunpack.c.l.b16 %v179
    %v483 = vunpack.c.l.b16 %v180
    %v484 = vunpack.c.l.b16 %v181
    %v485 = vunpack.c.l.b16 %v182
    %v486 = vunpack.c.l.b16 %v183
    %v487 = vunpack.c.l.b16 %v184
    %v488 = vunpack.c.l.b16 %v185
    %v489 = vunpack.c.l.b16 %v186
    %v490 = vunpack.c.l.b16 %v187
    %v491 = vunpack.c.l.b16 %v188
    %v492 = vunpack.c.l.b16 %v189
    %v493 = vunpack.c.l.b16 %v190
    %v494 = vunpack.c.l.b16 %v191
    %v495 = vunpack.c.l.b16 %v192
    %v496 = vunpack.c.l.b16 %v193
    %v497 = vunpack.c.l.b16 %v194
    %v498 = vunpack.c.l.b16 %v195
    %v499 = vunpack.c.l.b16 %v196
    %v500 = vunpack.c.l.b16 %v197
    %v501 = vunpack.c.l.b16 %v198
    %v502 = vunpack.c.l.b16 %v199
    %v503 = vunpack.c.l.b16 %v200
    %v504 = vunpack.c.l.b16 %v201
    %v505 = vunpack.c.l.b16 %v202
    %v506 = vunpack.c.l.b16 %v203
    %v507 = vpack.c.b16 %v380, %v379
    %v508 = vpack.c.b16 %v382, %v381
    %v509 = vpack.c.b16 %v384, %v383
    %v510 = vpack.c.b16 %v386, %v385
    %v511 = vpack.c.b16 %v388, %v387
    %v512 = vpack.c.b16 %v390, %v389
    %v513 = vpack.c.b16 %v392, %v391
    %v514 = vpack.c.b16 %v394, %v393
    %v515 = vpack.c.b16 %v396, %v395
    %v516 = vpack.c.b16 %v398, %v397
    %v517 = vpack.c.b16 %v400, %v399
    %v518 = vpack.c.b16 %v402, %v401
    %v519 = vpack.c.b16 %v404, %v403
    %v520 = vpack.c.b16 %v406, %v405
    %v521 = vpack.c.b16 %v408, %v407
    %v522 = vpack.c.b16 %v410, %v409
    %v523 = vpack.c.b16 %v412, %v411
    %v524 = vpack.c.b16 %v414, %v413
    %v525 = vpack.c.b16 %v416, %v415
    %v526 = vpack.c.b16 %v418, %v417
    %v527 = vpack.c.b16 %v420, %v419
    %v528 = vpack.c.b16 %v422, %v421
    %v529 = vpack.c.b16 %v424, %v423
    %v530 = vpack.c.b16 %v426, %v425
    %v531 = vpack.c.b16 %v428, %v427
    %v532 = vpack.c.b16 %v430, %v429
    %v533 = vpack.c.b16 %v432, %v431
    %v534 = vpack.c.b16 %v434, %v433
    %v535 = vpack.c.b16 %v436, %v435
    %v536 = vpack.c.b16 %v438, %v437
    %v537 = vpack.c.b16 %v440, %v439
    %v538 = vpack.c.b16 %v442, %v441
    %v539 = vpack.c.b16 %v444, %v443
    %v540 = vpack.c.b16 %v446, %v445
    %v541 = vpack.c.b16 %v448, %v447
    %v542 = vpack.c.b16 %v450, %v449
    %v543 = vpack.c.b16 %v452, %v451
    %v544 = vpack.c.b16 %v454, %v453
    %v545 = vpack.c.b16 %v456, %v455
    %v546 = vpack.c.b16 %v458, %v457
    %v547 = vpack.c.b16 %v460, %v459
    %v548 = vpack.c.b16 %v462, %v461
    %v549 = vpack.c.b16 %v464, %v463
    %v550 = vpack.c.b16 %v466, %v465
    %v551 = vpack.c.b16 %v468, %v467
    %v552 = vpack.c.b16 %v470, %v469
    %v553 = vpack.c.b16 %v472, %v471
    %v554 = vpack.c.b16 %v474, %v473
    %v555 = vpack.c.b16 %v476, %v475
    %v556 = vpack.c.b16 %v478, %v477
    %v557 = vpack.c.b16 %v480, %v479
    %v558 = vpack.c.b16 %v482, %v481
    %v559 = vpack.c.b16 %v484, %v483
    %v560 = vpack.c.b16 %v486, %v485
    %v561 = vpack.c.b16 %v488, %v487
    %v562 = vpack.c.b16 %v490, %v489
    %v563 = vpack.c.b16 %v492, %v491
    %v564 = vpack.c.b16 %v494, %v493
    %v565 = vpack.c.b16 %v496, %v495
    %v566 = vpack.c.b16 %v498, %v497
    %v567 = vpack.c.b16 %v500, %v499
    %v568 = vpack.c.b16 %v502, %v501
    %v569 = vpack.c.b16 %v504, %v503
    %v570 = vpack.c.b16 %v506, %v505
    %635 = vmatprep.subr.bf16.mxu0 0
    %636 = vmatpush1.bf16.msra.mxu0 %v507
    %637 = vmatprep.subr.bf16.mxu0 0
    %638 = vmatpush1.bf16.msra.mxu0 %v508
    %639 = vmatprep.subr.bf16.mxu0 0
    %640 = vmatpush1.bf16.msra.mxu0 %v509
    %641 = vmatprep.subr.bf16.mxu0 0
    %642 = vmatpush1.bf16.msra.mxu0 %v510
    %643 = vmatprep.subr.bf16.mxu0 0
    %644 = vmatpush1.bf16.msra.mxu0 %v511
    %645 = vmatprep.subr.bf16.mxu0 0
    %646 = vmatpush1.bf16.msra.mxu0 %v512
    %647 = vmatprep.subr.bf16.mxu0 0
    %648 = vmatpush1.bf16.msra.mxu0 %v513
    %649 = vmatprep.subr.bf16.mxu0 0
    %650 = vmatpush1.bf16.msra.mxu0 %v514
    %651 = vmatprep.subr.bf16.mxu0 0
    %652 = vmatpush1.bf16.msra.mxu0 %v515
    %653 = vmatprep.subr.bf16.mxu0 0
    %654 = vmatpush1.bf16.msra.mxu0 %v516
    %655 = vmatprep.subr.bf16.mxu0 0
    %656 = vmatpush1.bf16.msra.mxu0 %v517
    %657 = vmatprep.subr.bf16.mxu0 0
    %658 = vmatpush1.bf16.msra.mxu0 %v518
    %659 = vmatprep.subr.bf16.mxu0 0
    %660 = vmatpush1.bf16.msra.mxu0 %v519
    %661 = vmatprep.subr.bf16.mxu0 0
    %662 = vmatpush1.bf16.msra.mxu0 %v520
    %663 = vmatprep.subr.bf16.mxu0 0
    %664 = vmatpush1.bf16.msra.mxu0 %v521
    %665 = vmatprep.subr.bf16.mxu0 0
    %666 = vmatpush1.bf16.msra.mxu0 %v522
    %667 = vmatprep.mubr.bf16.mxu0 %v236
    %668 = vmatmul.mubr.bf16.gmra.mrb[0].mxu0 %v235
    %v669 = vpop.f32.mrb[0].mxu0
    %v670 = vadd.f32 %v209, %v669
    %v671 = vpop.f32.mrb[0].mxu0
    %v672 = vpop.f32.mrb[0].mxu0
    %v673 = vadd.f32 %v209, %v672
    %v674 = vpop.f32.mrb[0].mxu0
    %675 = vdwg.mxu0
    %676 = vmatprep.subr.bf16.mxu0 0
    %677 = vmatpush1.bf16.msra.mxu0 %v523
    %678 = vmatprep.subr.bf16.mxu0 0
    %679 = vmatpush1.bf16.msra.mxu0 %v524
    %680 = vmatprep.subr.bf16.mxu0 0
    %681 = vmatpush1.bf16.msra.mxu0 %v525
    %682 = vmatprep.subr.bf16.mxu0 0
    %683 = vmatpush1.bf16.msra.mxu0 %v526
    %684 = vmatprep.subr.bf16.mxu0 0
    %685 = vmatpush1.bf16.msra.mxu0 %v527
    %686 = vmatprep.subr.bf16.mxu0 0
    %687 = vmatpush1.bf16.msra.mxu0 %v528
    %688 = vmatprep.subr.bf16.mxu0 0
    %689 = vmatpush1.bf16.msra.mxu0 %v529
    %690 = vmatprep.subr.bf16.mxu0 0
    %691 = vmatpush1.bf16.msra.mxu0 %v530
    %692 = vmatprep.subr.bf16.mxu0 0
    %693 = vmatpush1.bf16.msra.mxu0 %v531
    %694 = vmatprep.subr.bf16.mxu0 0
    %695 = vmatpush1.bf16.msra.mxu0 %v532
    %696 = vmatprep.subr.bf16.mxu0 0
    %697 = vmatpush1.bf16.msra.mxu0 %v533
    %698 = vmatprep.subr.bf16.mxu0 0
    %699 = vmatpush1.bf16.msra.mxu0 %v534
    %700 = vmatprep.subr.bf16.mxu0 0
    %701 = vmatpush1.bf16.msra.mxu0 %v535
    %702 = vmatprep.subr.bf16.mxu0 0
    %703 = vmatpush1.bf16.msra.mxu0 %v536
    %704 = vmatprep.subr.bf16.mxu0 0
    %705 = vmatpush1.bf16.msra.mxu0 %v537
    %706 = vmatprep.subr.bf16.mxu0 0
    %707 = vmatpush1.bf16.msra.mxu0 %v538
    %708 = vmatprep.mubr.bf16.mxu0 %v238
    %709 = vmatmul.mubr.bf16.gmra.mrb[0].mxu0 %v237
    %v710 = vpop.f32.mrb[0].mxu0
    %v711 = vadd.f32 %v670, %v710
    %v712 = vpop.f32.mrb[0].mxu0
    %v713 = vpop.f32.mrb[0].mxu0
    %v714 = vadd.f32 %v673, %v713
    %v715 = vpop.f32.mrb[0].mxu0
    %716 = vdwg.mxu0
    %717 = vmatprep.subr.bf16.mxu0 0
    %718 = vmatpush1.bf16.msra.mxu0 %v539
    %719 = vmatprep.subr.bf16.mxu0 0
    %720 = vmatpush1.bf16.msra.mxu0 %v540
    %721 = vmatprep.subr.bf16.mxu0 0
    %722 = vmatpush1.bf16.msra.mxu0 %v541
    %723 = vmatprep.subr.bf16.mxu0 0
    %724 = vmatpush1.bf16.msra.mxu0 %v542
    %725 = vmatprep.subr.bf16.mxu0 0
    %726 = vmatpush1.bf16.msra.mxu0 %v543
    %727 = vmatprep.subr.bf16.mxu0 0
    %728 = vmatpush1.bf16.msra.mxu0 %v544
    %729 = vmatprep.subr.bf16.mxu0 0
    %730 = vmatpush1.bf16.msra.mxu0 %v545
    %731 = vmatprep.subr.bf16.mxu0 0
    %732 = vmatpush1.bf16.msra.mxu0 %v546
    %733 = vmatprep.subr.bf16.mxu0 0
    %734 = vmatpush1.bf16.msra.mxu0 %v547
    %735 = vmatprep.subr.bf16.mxu0 0
    %736 = vmatpush1.bf16.msra.mxu0 %v548
    %737 = vmatprep.subr.bf16.mxu0 0
    %738 = vmatpush1.bf16.msra.mxu0 %v549
    %739 = vmatprep.subr.bf16.mxu0 0
    %740 = vmatpush1.bf16.msra.mxu0 %v550
    %741 = vmatprep.subr.bf16.mxu0 0
    %742 = vmatpush1.bf16.msra.mxu0 %v551
    %743 = vmatprep.subr.bf16.mxu0 0
    %744 = vmatpush1.bf16.msra.mxu0 %v552
    %745 = vmatprep.subr.bf16.mxu0 0
    %746 = vmatpush1.bf16.msra.mxu0 %v553
    %747 = vmatprep.subr.bf16.mxu0 0
    %748 = vmatpush1.bf16.msra.mxu0 %v554
    %749 = vmatprep.mubr.bf16.mxu0 %v240
    %750 = vmatmul.mubr.bf16.gmra.mrb[0].mxu0 %v239
    %v751 = vpop.f32.mrb[0].mxu0
    %v752 = vadd.f32 %v711, %v751
    %v753 = vpop.f32.mrb[0].mxu0
    %v754 = vpop.f32.mrb[0].mxu0
    %v755 = vadd.f32 %v714, %v754
    %v756 = vpop.f32.mrb[0].mxu0
    %757 = vdwg.mxu0
    %758 = vmatprep.subr.bf16.mxu0 0
    %759 = vmatpush1.bf16.msra.mxu0 %v555
    %760 = vmatprep.subr.bf16.mxu0 0
    %761 = vmatpush1.bf16.msra.mxu0 %v556
    %762 = vmatprep.subr.bf16.mxu0 0
    %763 = vmatpush1.bf16.msra.mxu0 %v557
    %764 = vmatprep.subr.bf16.mxu0 0
    %765 = vmatpush1.bf16.msra.mxu0 %v558
    %766 = vmatprep.subr.bf16.mxu0 0
    %767 = vmatpush1.bf16.msra.mxu0 %v559
    %768 = vmatprep.subr.bf16.mxu0 0
    %769 = vmatpush1.bf16.msra.mxu0 %v560
    %770 = vmatprep.subr.bf16.mxu0 0
    %771 = vmatpush1.bf16.msra.mxu0 %v561
    %772 = vmatprep.subr.bf16.mxu0 0
    %773 = vmatpush1.bf16.msra.mxu0 %v562
    %774 = vmatprep.subr.bf16.mxu0 0
    %775 = vmatpush1.bf16.msra.mxu0 %v563
    %776 = vmatprep.subr.bf16.mxu0 0
    %777 = vmatpush1.bf16.msra.mxu0 %v564
    %778 = vmatprep.subr.bf16.mxu0 0
    %779 = vmatpush1.bf16.msra.mxu0 %v565
    %780 = vmatprep.subr.bf16.mxu0 0
    %781 = vmatpush1.bf16.msra.mxu0 %v566
    %782 = vmatprep.subr.bf16.mxu0 0
    %783 = vmatpush1.bf16.msra.mxu0 %v567
    %784 = vmatprep.subr.bf16.mxu0 0
    %785 = vmatpush1.bf16.msra.mxu0 %v568
    %786 = vmatprep.subr.bf16.mxu0 0
    %787 = vmatpush1.bf16.msra.mxu0 %v569
    %788 = vmatprep.subr.bf16.mxu0 0
    %789 = vmatpush1.bf16.msra.mxu0 %v570
    %790 = vmatprep.mubr.bf16.mxu0 %v242
    %791 = vmatmul.mubr.bf16.gmra.mrb[0].mxu0 %v241
    %v792 = vpop.f32.mrb[0].mxu0
    %v793 = vadd.f32 %v752, %v792
    %v794 = vpop.f32.mrb[0].mxu0
    %v795 = vpop.f32.mrb[0].mxu0
    %v796 = vadd.f32 %v755, %v795
    %v797 = vpop.f32.mrb[0].mxu0
    %798 = vdwg.mxu0
    %v799 = vmax.f32 %v793, 0.0
    %v800 = vmax.f32 %v796, 0.0
    %v801 = vpack.c.bf16 %v800, %v799
    %v802 = vld [vmem:[#allocation4] sm:$0xff]
    %v803 = vld [vmem:[#allocation4 + $0x8] sm:$0xff]
    %v804 = vld [vmem:[#allocation4 + $0x10] sm:$0xff]
    %v805 = vld [vmem:[#allocation4 + $0x18] sm:$0xff]
    %v806 = vld [vmem:[#allocation4 + $0x20] sm:$0xff]
    %v807 = vld [vmem:[#allocation4 + $0x28] sm:$0xff]
    %v808 = vld [vmem:[#allocation4 + $0x30] sm:$0xff]
    %v809 = vld [vmem:[#allocation4 + $0x38] sm:$0xff]
    %v810 = vld [vmem:[#allocation4 + $0x40] sm:$0xff]
    %v811 = vld [vmem:[#allocation4 + $0x48] sm:$0xff]
    %v812 = vld [vmem:[#allocation4 + $0x50] sm:$0xff]
    %v813 = vld [vmem:[#allocation4 + $0x58] sm:$0xff]
    %v814 = vld [vmem:[#allocation4 + $0x60] sm:$0xff]
    %v815 = vld [vmem:[#allocation4 + $0x68] sm:$0xff]
    %v816 = vld [vmem:[#allocation4 + $0x70] sm:$0xff]
    %v817 = vld [vmem:[#allocation4 + $0x78] sm:$0xff]
    %v818 = vld [vmem:[%s4] sm:$0x3]
    %v820 = vlaneseq
    %v821 = vshrl.u32 %v820, 7
    %v822 = vsub.s32 0, %v821
    %v823 = vrot.slane %v818, %v822
    %v824 = vlaneseq
    %v825 = vshrl.u32 %v824, 7
    %v826 = vsub.s32 1, %v825
    %v827 = vrot.slane %v818, %v826
    %v846 = vunpack.c.l.b16 %v802
    %v847 = vunpack.c.h.b16 %v802
    %v848 = vunpack.c.l.b16 %v803
    %v849 = vunpack.c.h.b16 %v803
    %v850 = vunpack.c.l.b16 %v804
    %v851 = vunpack.c.h.b16 %v804
    %v852 = vunpack.c.l.b16 %v805
    %v853 = vunpack.c.h.b16 %v805
    %v854 = vunpack.c.l.b16 %v806
    %v855 = vunpack.c.h.b16 %v806
    %v856 = vunpack.c.l.b16 %v807
    %v857 = vunpack.c.h.b16 %v807
    %v858 = vunpack.c.l.b16 %v808
    %v859 = vunpack.c.h.b16 %v808
    %v860 = vunpack.c.l.b16 %v809
    %v861 = vunpack.c.h.b16 %v809
    %v862 = vunpack.c.l.b16 %v810
    %v863 = vunpack.c.h.b16 %v810
    %v864 = vunpack.c.l.b16 %v811
    %v865 = vunpack.c.h.b16 %v811
    %v866 = vunpack.c.l.b16 %v812
    %v867 = vunpack.c.h.b16 %v812
    %v868 = vunpack.c.l.b16 %v813
    %v869 = vunpack.c.h.b16 %v813
    %v870 = vunpack.c.l.b16 %v814
    %v871 = vunpack.c.h.b16 %v814
    %v872 = vunpack.c.l.b16 %v815
    %v873 = vunpack.c.h.b16 %v815
    %v874 = vunpack.c.l.b16 %v816
    %v875 = vunpack.c.h.b16 %v816
    %v876 = vunpack.c.l.b16 %v817
    %v877 = vunpack.c.h.b16 %v817
    %v878 = vpack.c.b16 %v848, %v846
    %v879 = vpack.c.b16 %v849, %v847
    %v880 = vpack.c.b16 %v852, %v850
    %v881 = vpack.c.b16 %v853, %v851
    %v882 = vpack.c.b16 %v856, %v854
    %v883 = vpack.c.b16 %v857, %v855
    %v884 = vpack.c.b16 %v860, %v858
    %v885 = vpack.c.b16 %v861, %v859
    %v886 = vpack.c.b16 %v864, %v862
    %v887 = vpack.c.b16 %v865, %v863
    %v888 = vpack.c.b16 %v868, %v866
    %v889 = vpack.c.b16 %v869, %v867
    %v890 = vpack.c.b16 %v872, %v870
    %v891 = vpack.c.b16 %v873, %v871
    %v892 = vpack.c.b16 %v876, %v874
    %v893 = vpack.c.b16 %v877, %v875
    %910 = vmatprep.subr.bf16.mxu0 %v879
    %911 = vmatpush1.bf16.msra.mxu0 %v878
    %912 = vmatprep.subr.bf16.mxu0 %v881
    %913 = vmatpush1.bf16.msra.mxu0 %v880
    %914 = vmatprep.subr.bf16.mxu0 %v883
    %915 = vmatpush1.bf16.msra.mxu0 %v882
    %916 = vmatprep.subr.bf16.mxu0 %v885
    %917 = vmatpush1.bf16.msra.mxu0 %v884
    %918 = vmatprep.subr.bf16.mxu0 %v887
    %919 = vmatpush1.bf16.msra.mxu0 %v886
    %920 = vmatprep.subr.bf16.mxu0 %v889
    %921 = vmatpush1.bf16.msra.mxu0 %v888
    %922 = vmatprep.subr.bf16.mxu0 %v891
    %923 = vmatpush1.bf16.msra.mxu0 %v890
    %924 = vmatprep.subr.bf16.mxu0 %v893
    %925 = vmatpush1.bf16.msra.mxu0 %v892
    %926 = vmatprep.subr.bf16.mxu0 0
    %927 = vmatpush1.bf16.msra.mxu0 0
    %928 = vmatprep.subr.bf16.mxu0 0
    %929 = vmatpush1.bf16.msra.mxu0 0
    %930 = vmatprep.subr.bf16.mxu0 0
    %931 = vmatpush1.bf16.msra.mxu0 0
    %932 = vmatprep.subr.bf16.mxu0 0
    %933 = vmatpush1.bf16.msra.mxu0 0
    %934 = vmatprep.subr.bf16.mxu0 0
    %935 = vmatpush1.bf16.msra.mxu0 0
    %936 = vmatprep.subr.bf16.mxu0 0
    %937 = vmatpush1.bf16.msra.mxu0 0
    %938 = vmatprep.subr.bf16.mxu0 0
    %939 = vmatpush1.bf16.msra.mxu0 0
    %940 = vmatprep.subr.bf16.mxu0 0
    %941 = vmatpush1.bf16.msra.mxu0 0
    %942 = vmatprep.mubr.bf16.mxu0 0
    %943 = vmatmul.mubr.bf16.gmra.mrb[0].mxu0 %v801
    %v944 = vpop.f32.mrb[0].mxu0
    %v945 = vadd.f32 %v823, %v944
    %v946 = vpop.f32.mrb[0].mxu0
    %v947 = vadd.f32 %v827, %v946
    %v948 = vpop.f32.mrb[0].mxu0
    %v949 = vadd.f32 %v823, %v948
    %v950 = vpop.f32.mrb[0].mxu0
    %v951 = vadd.f32 %v827, %v950
    %952 = vdwg.mxu0
    %v953 = vmax.f32 %v945, 0.0
    %v954 = vmax.f32 %v947, 0.0
    %v955 = vmax.f32 %v949, 0.0
    %v956 = vmax.f32 %v951, 0.0
    %v957 = vpack.c.bf16 %v955, %v953
    %v958 = vpack.c.bf16 %v956, %v954
    %v959 = vld [vmem:[#allocation6] sm:$0xff]
    %v960 = vld [vmem:[#allocation6 + $0x8] sm:$0xff]
    %v961 = vld [vmem:[#allocation6 + $0x10] sm:$0xff]
    %v962 = vld [vmem:[#allocation6 + $0x18] sm:$0xff]
    %v963 = vld [vmem:[#allocation6 + $0x20] sm:$0xff]
    %v964 = vld [vmem:[#allocation6 + $0x28] sm:$0xff]
    %v965 = vld [vmem:[#allocation6 + $0x30] sm:$0xff]
    %v966 = vld [vmem:[#allocation6 + $0x38] sm:$0xff]
    %v967 = vld [vmem:[#allocation6 + $0x40] sm:$0xff]
    %v968 = vld [vmem:[#allocation6 + $0x48] sm:$0xff]
    %v969 = vld [vmem:[#allocation6 + $0x50] sm:$0xff]
    %v970 = vld [vmem:[#allocation6 + $0x58] sm:$0xff]
    %v971 = vld [vmem:[#allocation6 + $0x60] sm:$0xff]
    %v972 = vld [vmem:[#allocation6 + $0x68] sm:$0xff]
    %v973 = vld [vmem:[#allocation6 + $0x70] sm:$0xff]
    %v974 = vld [vmem:[#allocation6 + $0x78] sm:$0xff]
    %v975 = vld [vmem:[#allocation6 + $0x80] sm:$0xff]
    %v976 = vld [vmem:[#allocation6 + $0x88] sm:$0xff]
    %v977 = vld [vmem:[#allocation6 + $0x90] sm:$0xff]
    %v978 = vld [vmem:[#allocation6 + $0x98] sm:$0xff]
    %v979 = vld [vmem:[#allocation6 + $0xa0] sm:$0xff]
    %v980 = vld [vmem:[#allocation6 + $0xa8] sm:$0xff]
    %v981 = vld [vmem:[#allocation6 + $0xb0] sm:$0xff]
    %v982 = vld [vmem:[#allocation6 + $0xb8] sm:$0xff]
    %v983 = vld [vmem:[#allocation6 + $0xc0] sm:$0xff]
    %v984 = vld [vmem:[#allocation6 + $0xc8] sm:$0xff]
    %v985 = vld [vmem:[#allocation6 + $0xd0] sm:$0xff]
    %v986 = vld [vmem:[#allocation6 + $0xd8] sm:$0xff]
    %v987 = vld [vmem:[#allocation6 + $0xe0] sm:$0xff]
    %v988 = vld [vmem:[#allocation6 + $0xe8] sm:$0xff]
    %v989 = vld [vmem:[#allocation6 + $0xf0] sm:$0xff]
    %v990 = vld [vmem:[#allocation6 + $0xf8] sm:$0xff]
    %v991 = vld [vmem:[#allocation6 + $0x100] sm:$0xff]
    %v992 = vld [vmem:[#allocation6 + $0x108] sm:$0xff]
    %v993 = vld [vmem:[#allocation6 + $0x110] sm:$0xff]
    %v994 = vld [vmem:[#allocation6 + $0x118] sm:$0xff]
    %v995 = vld [vmem:[#allocation6 + $0x120] sm:$0xff]
    %v996 = vld [vmem:[#allocation6 + $0x128] sm:$0xff]
    %v997 = vld [vmem:[#allocation6 + $0x130] sm:$0xff]
    %v998 = vld [vmem:[#allocation6 + $0x138] sm:$0xff]
    %v999 = vld [vmem:[#allocation6 + $0x140] sm:$0xff]
    %v1000 = vld [vmem:[#allocation6 + $0x148] sm:$0xff]
    %v1001 = vld [vmem:[#allocation6 + $0x150] sm:$0xff]
    %v1002 = vld [vmem:[#allocation6 + $0x158] sm:$0xff]
    %v1003 = vld [vmem:[#allocation6 + $0x160] sm:$0xff]
    %v1004 = vld [vmem:[#allocation6 + $0x168] sm:$0xff]
    %v1005 = vld [vmem:[#allocation6 + $0x170] sm:$0xff]
    %v1006 = vld [vmem:[#allocation6 + $0x178] sm:$0xff]
    %v1007 = vld [vmem:[#allocation6 + $0x180] sm:$0xff]
    %v1008 = vld [vmem:[#allocation6 + $0x188] sm:$0xff]
    %v1009 = vld [vmem:[#allocation6 + $0x190] sm:$0xff]
    %v1010 = vld [vmem:[#allocation6 + $0x198] sm:$0xff]
    %v1011 = vld [vmem:[#allocation6 + $0x1a0] sm:$0xff]
    %v1012 = vld [vmem:[#allocation6 + $0x1a8] sm:$0xff]
    %v1013 = vld [vmem:[#allocation6 + $0x1b0] sm:$0xff]
    %v1014 = vld [vmem:[#allocation6 + $0x1b8] sm:$0xff]
    %v1015 = vld [vmem:[#allocation6 + $0x1c0] sm:$0xff]
    %v1016 = vld [vmem:[#allocation6 + $0x1c8] sm:$0xff]
    %v1017 = vld [vmem:[#allocation6 + $0x1d0] sm:$0xff]
    %v1018 = vld [vmem:[#allocation6 + $0x1d8] sm:$0xff]
    %v1019 = vld [vmem:[#allocation6 + $0x1e0] sm:$0xff]
    %v1020 = vld [vmem:[#allocation6 + $0x1e8] sm:$0xff]
    %v1021 = vld [vmem:[#allocation6 + $0x1f0] sm:$0xff]
    %v1022 = vld [vmem:[#allocation6 + $0x1f8] sm:$0xff]
    %v1023 = vld [vmem:[#allocation6 + $0x200] sm:$0xff]
    %v1024 = vld [vmem:[#allocation6 + $0x208] sm:$0xff]
    %v1025 = vld [vmem:[#allocation6 + $0x210] sm:$0xff]
    %v1026 = vld [vmem:[#allocation6 + $0x218] sm:$0xff]
    %v1027 = vld [vmem:[#allocation6 + $0x220] sm:$0xff]
    %v1028 = vld [vmem:[#allocation6 + $0x228] sm:$0xff]
    %v1029 = vld [vmem:[#allocation6 + $0x230] sm:$0xff]
    %v1030 = vld [vmem:[#allocation6 + $0x238] sm:$0xff]
    %v1031 = vld [vmem:[#allocation6 + $0x240] sm:$0xff]
    %v1032 = vld [vmem:[#allocation6 + $0x248] sm:$0xff]
    %v1033 = vld [vmem:[#allocation6 + $0x250] sm:$0xff]
    %v1034 = vld [vmem:[#allocation6 + $0x258] sm:$0xff]
    %v1035 = vld [vmem:[#allocation6 + $0x260] sm:$0xff]
    %v1036 = vld [vmem:[#allocation6 + $0x268] sm:$0xff]
    %v1037 = vld [vmem:[#allocation6 + $0x270] sm:$0xff]
    %v1038 = vld [vmem:[#allocation6 + $0x278] sm:$0xff]
    %v1039 = vld [vmem:[#allocation6 + $0x280] sm:$0xff]
    %v1040 = vld [vmem:[#allocation6 + $0x288] sm:$0xff]
    %v1041 = vld [vmem:[#allocation6 + $0x290] sm:$0xff]
    %v1042 = vld [vmem:[#allocation6 + $0x298] sm:$0xff]
    %v1043 = vld [vmem:[#allocation6 + $0x2a0] sm:$0xff]
    %v1044 = vld [vmem:[#allocation6 + $0x2a8] sm:$0xff]
    %v1045 = vld [vmem:[#allocation6 + $0x2b0] sm:$0xff]
    %v1046 = vld [vmem:[#allocation6 + $0x2b8] sm:$0xff]
    %v1047 = vld [vmem:[#allocation6 + $0x2c0] sm:$0xff]
    %v1048 = vld [vmem:[#allocation6 + $0x2c8] sm:$0xff]
    %v1049 = vld [vmem:[#allocation6 + $0x2d0] sm:$0xff]
    %v1050 = vld [vmem:[#allocation6 + $0x2d8] sm:$0xff]
    %v1051 = vld [vmem:[#allocation6 + $0x2e0] sm:$0xff]
    %v1052 = vld [vmem:[#allocation6 + $0x2e8] sm:$0xff]
    %v1053 = vld [vmem:[#allocation6 + $0x2f0] sm:$0xff]
    %v1054 = vld [vmem:[#allocation6 + $0x2f8] sm:$0xff]
    %v1055 = vld [vmem:[#allocation6 + $0x300] sm:$0xff]
    %v1056 = vld [vmem:[#allocation6 + $0x308] sm:$0xff]
    %v1057 = vld [vmem:[#allocation6 + $0x310] sm:$0xff]
    %v1058 = vld [vmem:[#allocation6 + $0x318] sm:$0xff]
    %v1059 = vld [vmem:[#allocation6 + $0x320] sm:$0xff]
    %v1060 = vld [vmem:[#allocation6 + $0x328] sm:$0xff]
    %v1061 = vld [vmem:[#allocation6 + $0x330] sm:$0xff]
    %v1062 = vld [vmem:[#allocation6 + $0x338] sm:$0xff]
    %v1063 = vld [vmem:[#allocation6 + $0x340] sm:$0xff]
    %v1064 = vld [vmem:[#allocation6 + $0x348] sm:$0xff]
    %v1065 = vld [vmem:[#allocation6 + $0x350] sm:$0xff]
    %v1066 = vld [vmem:[#allocation6 + $0x358] sm:$0xff]
    %v1067 = vld [vmem:[#allocation6 + $0x360] sm:$0xff]
    %v1068 = vld [vmem:[#allocation6 + $0x368] sm:$0xff]
    %v1069 = vld [vmem:[#allocation6 + $0x370] sm:$0xff]
    %v1070 = vld [vmem:[#allocation6 + $0x378] sm:$0xff]
    %v1071 = vld [vmem:[#allocation6 + $0x380] sm:$0xff]
    %v1072 = vld [vmem:[#allocation6 + $0x388] sm:$0xff]
    %v1073 = vld [vmem:[#allocation6 + $0x390] sm:$0xff]
    %v1074 = vld [vmem:[#allocation6 + $0x398] sm:$0xff]
    %v1075 = vld [vmem:[#allocation6 + $0x3a0] sm:$0xff]
    %v1076 = vld [vmem:[#allocation6 + $0x3a8] sm:$0xff]
    %v1077 = vld [vmem:[#allocation6 + $0x3b0] sm:$0xff]
    %v1078 = vld [vmem:[#allocation6 + $0x3b8] sm:$0xff]
    %v1079 = vld [vmem:[#allocation6 + $0x3c0] sm:$0xff]
    %v1080 = vld [vmem:[#allocation6 + $0x3c8] sm:$0xff]
    %v1081 = vld [vmem:[#allocation6 + $0x3d0] sm:$0xff]
    %v1082 = vld [vmem:[#allocation6 + $0x3d8] sm:$0xff]
    %v1083 = vld [vmem:[#allocation6 + $0x3e0] sm:$0xff]
    %v1084 = vld [vmem:[#allocation6 + $0x3e8] sm:$0xff]
    %v1085 = vld [vmem:[#allocation6 + $0x3f0] sm:$0xff]
    %v1086 = vld [vmem:[#allocation6 + $0x3f8] sm:$0xff]
    %v1087 = vld [vmem:[%s6] sm:$0xff]
    %v1089 = vlaneseq
    %v1090 = vshrl.u32 %v1089, 7
    %v1091 = vsub.s32 0, %v1090
    %v1092 = vrot.slane %v1087, %v1091
    %v1093 = vlaneseq
    %v1094 = vshrl.u32 %v1093, 7
    %v1095 = vsub.s32 1, %v1094
    %v1096 = vrot.slane %v1087, %v1095
    %v1097 = vlaneseq
    %v1098 = vshrl.u32 %v1097, 7
    %v1099 = vsub.s32 2, %v1098
    %v1100 = vrot.slane %v1087, %v1099
    %v1101 = vlaneseq
    %v1102 = vshrl.u32 %v1101, 7
    %v1103 = vsub.s32 3, %v1102
    %v1104 = vrot.slane %v1087, %v1103
    %v1105 = vlaneseq
    %v1106 = vshrl.u32 %v1105, 7
    %v1107 = vsub.s32 4, %v1106
    %v1108 = vrot.slane %v1087, %v1107
    %v1109 = vlaneseq
    %v1110 = vshrl.u32 %v1109, 7
    %v1111 = vsub.s32 5, %v1110
    %v1112 = vrot.slane %v1087, %v1111
    %v1113 = vlaneseq
    %v1114 = vshrl.u32 %v1113, 7
    %v1115 = vsub.s32 6, %v1114
    %v1116 = vrot.slane %v1087, %v1115
    %v1117 = vlaneseq
    %v1118 = vshrl.u32 %v1117, 7
    %v1119 = vsub.s32 7, %v1118
    %v1120 = vrot.slane %v1087, %v1119
    %v1257 = vunpack.c.l.b16 %v959
    %v1258 = vunpack.c.h.b16 %v959
    %v1259 = vunpack.c.l.b16 %v960
    %v1260 = vunpack.c.h.b16 %v960
    %v1261 = vunpack.c.l.b16 %v961
    %v1262 = vunpack.c.h.b16 %v961
    %v1263 = vunpack.c.l.b16 %v962
    %v1264 = vunpack.c.h.b16 %v962
    %v1265 = vunpack.c.l.b16 %v963
    %v1266 = vunpack.c.h.b16 %v963
    %v1267 = vunpack.c.l.b16 %v964
    %v1268 = vunpack.c.h.b16 %v964
    %v1269 = vunpack.c.l.b16 %v965
    %v1270 = vunpack.c.h.b16 %v965
    %v1271 = vunpack.c.l.b16 %v966
    %v1272 = vunpack.c.h.b16 %v966
    %v1273 = vunpack.c.l.b16 %v967
    %v1274 = vunpack.c.h.b16 %v967
    %v1275 = vunpack.c.l.b16 %v968
    %v1276 = vunpack.c.h.b16 %v968
    %v1277 = vunpack.c.l.b16 %v969
    %v1278 = vunpack.c.h.b16 %v969
    %v1279 = vunpack.c.l.b16 %v970
    %v1280 = vunpack.c.h.b16 %v970
    %v1281 = vunpack.c.l.b16 %v971
    %v1282 = vunpack.c.h.b16 %v971
    %v1283 = vunpack.c.l.b16 %v972
    %v1284 = vunpack.c.h.b16 %v972
    %v1285 = vunpack.c.l.b16 %v973
    %v1286 = vunpack.c.h.b16 %v973
    %v1287 = vunpack.c.l.b16 %v974
    %v1288 = vunpack.c.h.b16 %v974
    %v1289 = vunpack.c.l.b16 %v975
    %v1290 = vunpack.c.h.b16 %v975
    %v1291 = vunpack.c.l.b16 %v976
    %v1292 = vunpack.c.h.b16 %v976
    %v1293 = vunpack.c.l.b16 %v977
    %v1294 = vunpack.c.h.b16 %v977
    %v1295 = vunpack.c.l.b16 %v978
    %v1296 = vunpack.c.h.b16 %v978
    %v1297 = vunpack.c.l.b16 %v979
    %v1298 = vunpack.c.h.b16 %v979
    %v1299 = vunpack.c.l.b16 %v980
    %v1300 = vunpack.c.h.b16 %v980
    %v1301 = vunpack.c.l.b16 %v981
    %v1302 = vunpack.c.h.b16 %v981
    %v1303 = vunpack.c.l.b16 %v982
    %v1304 = vunpack.c.h.b16 %v982
    %v1305 = vunpack.c.l.b16 %v983
    %v1306 = vunpack.c.h.b16 %v983
    %v1307 = vunpack.c.l.b16 %v984
    %v1308 = vunpack.c.h.b16 %v984
    %v1309 = vunpack.c.l.b16 %v985
    %v1310 = vunpack.c.h.b16 %v985
    %v1311 = vunpack.c.l.b16 %v986
    %v1312 = vunpack.c.h.b16 %v986
    %v1313 = vunpack.c.l.b16 %v987
    %v1314 = vunpack.c.h.b16 %v987
    %v1315 = vunpack.c.l.b16 %v988
    %v1316 = vunpack.c.h.b16 %v988
    %v1317 = vunpack.c.l.b16 %v989
    %v1318 = vunpack.c.h.b16 %v989
    %v1319 = vunpack.c.l.b16 %v990
    %v1320 = vunpack.c.h.b16 %v990
    %v1321 = vunpack.c.l.b16 %v991
    %v1322 = vunpack.c.h.b16 %v991
    %v1323 = vunpack.c.l.b16 %v992
    %v1324 = vunpack.c.h.b16 %v992
    %v1325 = vunpack.c.l.b16 %v993
    %v1326 = vunpack.c.h.b16 %v993
    %v1327 = vunpack.c.l.b16 %v994
    %v1328 = vunpack.c.h.b16 %v994
    %v1329 = vunpack.c.l.b16 %v995
    %v1330 = vunpack.c.h.b16 %v995
    %v1331 = vunpack.c.l.b16 %v996
    %v1332 = vunpack.c.h.b16 %v996
    %v1333 = vunpack.c.l.b16 %v997
    %v1334 = vunpack.c.h.b16 %v997
    %v1335 = vunpack.c.l.b16 %v998
    %v1336 = vunpack.c.h.b16 %v998
    %v1337 = vunpack.c.l.b16 %v999
    %v1338 = vunpack.c.h.b16 %v999
    %v1339 = vunpack.c.l.b16 %v1000
    %v1340 = vunpack.c.h.b16 %v1000
    %v1341 = vunpack.c.l.b16 %v1001
    %v1342 = vunpack.c.h.b16 %v1001
    %v1343 = vunpack.c.l.b16 %v1002
    %v1344 = vunpack.c.h.b16 %v1002
    %v1345 = vunpack.c.l.b16 %v1003
    %v1346 = vunpack.c.h.b16 %v1003
    %v1347 = vunpack.c.l.b16 %v1004
    %v1348 = vunpack.c.h.b16 %v1004
    %v1349 = vunpack.c.l.b16 %v1005
    %v1350 = vunpack.c.h.b16 %v1005
    %v1351 = vunpack.c.l.b16 %v1006
    %v1352 = vunpack.c.h.b16 %v1006
    %v1353 = vunpack.c.l.b16 %v1007
    %v1354 = vunpack.c.h.b16 %v1007
    %v1355 = vunpack.c.l.b16 %v1008
    %v1356 = vunpack.c.h.b16 %v1008
    %v1357 = vunpack.c.l.b16 %v1009
    %v1358 = vunpack.c.h.b16 %v1009
    %v1359 = vunpack.c.l.b16 %v1010
    %v1360 = vunpack.c.h.b16 %v1010
    %v1361 = vunpack.c.l.b16 %v1011
    %v1362 = vunpack.c.h.b16 %v1011
    %v1363 = vunpack.c.l.b16 %v1012
    %v1364 = vunpack.c.h.b16 %v1012
    %v1365 = vunpack.c.l.b16 %v1013
    %v1366 = vunpack.c.h.b16 %v1013
    %v1367 = vunpack.c.l.b16 %v1014
    %v1368 = vunpack.c.h.b16 %v1014
    %v1369 = vunpack.c.l.b16 %v1015
    %v1370 = vunpack.c.h.b16 %v1015
    %v1371 = vunpack.c.l.b16 %v1016
    %v1372 = vunpack.c.h.b16 %v1016
    %v1373 = vunpack.c.l.b16 %v1017
    %v1374 = vunpack.c.h.b16 %v1017
    %v1375 = vunpack.c.l.b16 %v1018
    %v1376 = vunpack.c.h.b16 %v1018
    %v1377 = vunpack.c.l.b16 %v1019
    %v1378 = vunpack.c.h.b16 %v1019
    %v1379 = vunpack.c.l.b16 %v1020
    %v1380 = vunpack.c.h.b16 %v1020
    %v1381 = vunpack.c.l.b16 %v1021
    %v1382 = vunpack.c.h.b16 %v1021
    %v1383 = vunpack.c.l.b16 %v1022
    %v1384 = vunpack.c.h.b16 %v1022
    %v1385 = vunpack.c.l.b16 %v1023
    %v1386 = vunpack.c.h.b16 %v1023
    %v1387 = vunpack.c.l.b16 %v1024
    %v1388 = vunpack.c.h.b16 %v1024
    %v1389 = vunpack.c.l.b16 %v1025
    %v1390 = vunpack.c.h.b16 %v1025
    %v1391 = vunpack.c.l.b16 %v1026
    %v1392 = vunpack.c.h.b16 %v1026
    %v1393 = vunpack.c.l.b16 %v1027
    %v1394 = vunpack.c.h.b16 %v1027
    %v1395 = vunpack.c.l.b16 %v1028
    %v1396 = vunpack.c.h.b16 %v1028
    %v1397 = vunpack.c.l.b16 %v1029
    %v1398 = vunpack.c.h.b16 %v1029
    %v1399 = vunpack.c.l.b16 %v1030
    %v1400 = vunpack.c.h.b16 %v1030
    %v1401 = vunpack.c.l.b16 %v1031
    %v1402 = vunpack.c.h.b16 %v1031
    %v1403 = vunpack.c.l.b16 %v1032
    %v1404 = vunpack.c.h.b16 %v1032
    %v1405 = vunpack.c.l.b16 %v1033
    %v1406 = vunpack.c.h.b16 %v1033
    %v1407 = vunpack.c.l.b16 %v1034
    %v1408 = vunpack.c.h.b16 %v1034
    %v1409 = vunpack.c.l.b16 %v1035
    %v1410 = vunpack.c.h.b16 %v1035
    %v1411 = vunpack.c.l.b16 %v1036
    %v1412 = vunpack.c.h.b16 %v1036
    %v1413 = vunpack.c.l.b16 %v1037
    %v1414 = vunpack.c.h.b16 %v1037
    %v1415 = vunpack.c.l.b16 %v1038
    %v1416 = vunpack.c.h.b16 %v1038
    %v1417 = vunpack.c.l.b16 %v1039
    %v1418 = vunpack.c.h.b16 %v1039
    %v1419 = vunpack.c.l.b16 %v1040
    %v1420 = vunpack.c.h.b16 %v1040
    %v1421 = vunpack.c.l.b16 %v1041
    %v1422 = vunpack.c.h.b16 %v1041
    %v1423 = vunpack.c.l.b16 %v1042
    %v1424 = vunpack.c.h.b16 %v1042
    %v1425 = vunpack.c.l.b16 %v1043
    %v1426 = vunpack.c.h.b16 %v1043
    %v1427 = vunpack.c.l.b16 %v1044
    %v1428 = vunpack.c.h.b16 %v1044
    %v1429 = vunpack.c.l.b16 %v1045
    %v1430 = vunpack.c.h.b16 %v1045
    %v1431 = vunpack.c.l.b16 %v1046
    %v1432 = vunpack.c.h.b16 %v1046
    %v1433 = vunpack.c.l.b16 %v1047
    %v1434 = vunpack.c.h.b16 %v1047
    %v1435 = vunpack.c.l.b16 %v1048
    %v1436 = vunpack.c.h.b16 %v1048
    %v1437 = vunpack.c.l.b16 %v1049
    %v1438 = vunpack.c.h.b16 %v1049
    %v1439 = vunpack.c.l.b16 %v1050
    %v1440 = vunpack.c.h.b16 %v1050
    %v1441 = vunpack.c.l.b16 %v1051
    %v1442 = vunpack.c.h.b16 %v1051
    %v1443 = vunpack.c.l.b16 %v1052
    %v1444 = vunpack.c.h.b16 %v1052
    %v1445 = vunpack.c.l.b16 %v1053
    %v1446 = vunpack.c.h.b16 %v1053
    %v1447 = vunpack.c.l.b16 %v1054
    %v1448 = vunpack.c.h.b16 %v1054
    %v1449 = vunpack.c.l.b16 %v1055
    %v1450 = vunpack.c.h.b16 %v1055
    %v1451 = vunpack.c.l.b16 %v1056
    %v1452 = vunpack.c.h.b16 %v1056
    %v1453 = vunpack.c.l.b16 %v1057
    %v1454 = vunpack.c.h.b16 %v1057
    %v1455 = vunpack.c.l.b16 %v1058
    %v1456 = vunpack.c.h.b16 %v1058
    %v1457 = vunpack.c.l.b16 %v1059
    %v1458 = vunpack.c.h.b16 %v1059
    %v1459 = vunpack.c.l.b16 %v1060
    %v1460 = vunpack.c.h.b16 %v1060
    %v1461 = vunpack.c.l.b16 %v1061
    %v1462 = vunpack.c.h.b16 %v1061
    %v1463 = vunpack.c.l.b16 %v1062
    %v1464 = vunpack.c.h.b16 %v1062
    %v1465 = vunpack.c.l.b16 %v1063
    %v1466 = vunpack.c.h.b16 %v1063
    %v1467 = vunpack.c.l.b16 %v1064
    %v1468 = vunpack.c.h.b16 %v1064
    %v1469 = vunpack.c.l.b16 %v1065
    %v1470 = vunpack.c.h.b16 %v1065
    %v1471 = vunpack.c.l.b16 %v1066
    %v1472 = vunpack.c.h.b16 %v1066
    %v1473 = vunpack.c.l.b16 %v1067
    %v1474 = vunpack.c.h.b16 %v1067
    %v1475 = vunpack.c.l.b16 %v1068
    %v1476 = vunpack.c.h.b16 %v1068
    %v1477 = vunpack.c.l.b16 %v1069
    %v1478 = vunpack.c.h.b16 %v1069
    %v1479 = vunpack.c.l.b16 %v1070
    %v1480 = vunpack.c.h.b16 %v1070
    %v1481 = vunpack.c.l.b16 %v1071
    %v1482 = vunpack.c.h.b16 %v1071
    %v1483 = vunpack.c.l.b16 %v1072
    %v1484 = vunpack.c.h.b16 %v1072
    %v1485 = vunpack.c.l.b16 %v1073
    %v1486 = vunpack.c.h.b16 %v1073
    %v1487 = vunpack.c.l.b16 %v1074
    %v1488 = vunpack.c.h.b16 %v1074
    %v1489 = vunpack.c.l.b16 %v1075
    %v1490 = vunpack.c.h.b16 %v1075
    %v1491 = vunpack.c.l.b16 %v1076
    %v1492 = vunpack.c.h.b16 %v1076
    %v1493 = vunpack.c.l.b16 %v1077
    %v1494 = vunpack.c.h.b16 %v1077
    %v1495 = vunpack.c.l.b16 %v1078
    %v1496 = vunpack.c.h.b16 %v1078
    %v1497 = vunpack.c.l.b16 %v1079
    %v1498 = vunpack.c.h.b16 %v1079
    %v1499 = vunpack.c.l.b16 %v1080
    %v1500 = vunpack.c.h.b16 %v1080
    %v1501 = vunpack.c.l.b16 %v1081
    %v1502 = vunpack.c.h.b16 %v1081
    %v1503 = vunpack.c.l.b16 %v1082
    %v1504 = vunpack.c.h.b16 %v1082
    %v1505 = vunpack.c.l.b16 %v1083
    %v1506 = vunpack.c.h.b16 %v1083
    %v1507 = vunpack.c.l.b16 %v1084
    %v1508 = vunpack.c.h.b16 %v1084
    %v1509 = vunpack.c.l.b16 %v1085
    %v1510 = vunpack.c.h.b16 %v1085
    %v1511 = vunpack.c.l.b16 %v1086
    %v1512 = vunpack.c.h.b16 %v1086
    %v1513 = vpack.c.b16 %v1265, %v1257
    %v1514 = vpack.c.b16 %v1266, %v1258
    %v1515 = vpack.c.b16 %v1267, %v1259
    %v1516 = vpack.c.b16 %v1268, %v1260
    %v1517 = vpack.c.b16 %v1269, %v1261
    %v1518 = vpack.c.b16 %v1270, %v1262
    %v1519 = vpack.c.b16 %v1271, %v1263
    %v1520 = vpack.c.b16 %v1272, %v1264
    %v1521 = vpack.c.b16 %v1281, %v1273
    %v1522 = vpack.c.b16 %v1282, %v1274
    %v1523 = vpack.c.b16 %v1283, %v1275
    %v1524 = vpack.c.b16 %v1284, %v1276
    %v1525 = vpack.c.b16 %v1285, %v1277
    %v1526 = vpack.c.b16 %v1286, %v1278
    %v1527 = vpack.c.b16 %v1287, %v1279
    %v1528 = vpack.c.b16 %v1288, %v1280
    %v1529 = vpack.c.b16 %v1297, %v1289
    %v1530 = vpack.c.b16 %v1298, %v1290
    %v1531 = vpack.c.b16 %v1299, %v1291
    %v1532 = vpack.c.b16 %v1300, %v1292
    %v1533 = vpack.c.b16 %v1301, %v1293
    %v1534 = vpack.c.b16 %v1302, %v1294
    %v1535 = vpack.c.b16 %v1303, %v1295
    %v1536 = vpack.c.b16 %v1304, %v1296
    %v1537 = vpack.c.b16 %v1313, %v1305
    %v1538 = vpack.c.b16 %v1314, %v1306
    %v1539 = vpack.c.b16 %v1315, %v1307
    %v1540 = vpack.c.b16 %v1316, %v1308
    %v1541 = vpack.c.b16 %v1317, %v1309
    %v1542 = vpack.c.b16 %v1318, %v1310
    %v1543 = vpack.c.b16 %v1319, %v1311
    %v1544 = vpack.c.b16 %v1320, %v1312
    %v1545 = vpack.c.b16 %v1329, %v1321
    %v1546 = vpack.c.b16 %v1330, %v1322
    %v1547 = vpack.c.b16 %v1331, %v1323
    %v1548 = vpack.c.b16 %v1332, %v1324
    %v1549 = vpack.c.b16 %v1333, %v1325
    %v1550 = vpack.c.b16 %v1334, %v1326
    %v1551 = vpack.c.b16 %v1335, %v1327
    %v1552 = vpack.c.b16 %v1336, %v1328
    %v1553 = vpack.c.b16 %v1345, %v1337
    %v1554 = vpack.c.b16 %v1346, %v1338
    %v1555 = vpack.c.b16 %v1347, %v1339
    %v1556 = vpack.c.b16 %v1348, %v1340
    %v1557 = vpack.c.b16 %v1349, %v1341
    %v1558 = vpack.c.b16 %v1350, %v1342
    %v1559 = vpack.c.b16 %v1351, %v1343
    %v1560 = vpack.c.b16 %v1352, %v1344
    %v1561 = vpack.c.b16 %v1361, %v1353
    %v1562 = vpack.c.b16 %v1362, %v1354
    %v1563 = vpack.c.b16 %v1363, %v1355
    %v1564 = vpack.c.b16 %v1364, %v1356
    %v1565 = vpack.c.b16 %v1365, %v1357
    %v1566 = vpack.c.b16 %v1366, %v1358
    %v1567 = vpack.c.b16 %v1367, %v1359
    %v1568 = vpack.c.b16 %v1368, %v1360
    %v1569 = vpack.c.b16 %v1377, %v1369
    %v1570 = vpack.c.b16 %v1378, %v1370
    %v1571 = vpack.c.b16 %v1379, %v1371
    %v1572 = vpack.c.b16 %v1380, %v1372
    %v1573 = vpack.c.b16 %v1381, %v1373
    %v1574 = vpack.c.b16 %v1382, %v1374
    %v1575 = vpack.c.b16 %v1383, %v1375
    %v1576 = vpack.c.b16 %v1384, %v1376
    %v1577 = vpack.c.b16 %v1393, %v1385
    %v1578 = vpack.c.b16 %v1394, %v1386
    %v1579 = vpack.c.b16 %v1395, %v1387
    %v1580 = vpack.c.b16 %v1396, %v1388
    %v1581 = vpack.c.b16 %v1397, %v1389
    %v1582 = vpack.c.b16 %v1398, %v1390
    %v1583 = vpack.c.b16 %v1399, %v1391
    %v1584 = vpack.c.b16 %v1400, %v1392
    %v1585 = vpack.c.b16 %v1409, %v1401
    %v1586 = vpack.c.b16 %v1410, %v1402
    %v1587 = vpack.c.b16 %v1411, %v1403
    %v1588 = vpack.c.b16 %v1412, %v1404
    %v1589 = vpack.c.b16 %v1413, %v1405
    %v1590 = vpack.c.b16 %v1414, %v1406
    %v1591 = vpack.c.b16 %v1415, %v1407
    %v1592 = vpack.c.b16 %v1416, %v1408
    %v1593 = vpack.c.b16 %v1425, %v1417
    %v1594 = vpack.c.b16 %v1426, %v1418
    %v1595 = vpack.c.b16 %v1427, %v1419
    %v1596 = vpack.c.b16 %v1428, %v1420
    %v1597 = vpack.c.b16 %v1429, %v1421
    %v1598 = vpack.c.b16 %v1430, %v1422
    %v1599 = vpack.c.b16 %v1431, %v1423
    %v1600 = vpack.c.b16 %v1432, %v1424
    %v1601 = vpack.c.b16 %v1441, %v1433
    %v1602 = vpack.c.b16 %v1442, %v1434
    %v1603 = vpack.c.b16 %v1443, %v1435
    %v1604 = vpack.c.b16 %v1444, %v1436
    %v1605 = vpack.c.b16 %v1445, %v1437
    %v1606 = vpack.c.b16 %v1446, %v1438
    %v1607 = vpack.c.b16 %v1447, %v1439
    %v1608 = vpack.c.b16 %v1448, %v1440
    %v1609 = vpack.c.b16 %v1457, %v1449
    %v1610 = vpack.c.b16 %v1458, %v1450
    %v1611 = vpack.c.b16 %v1459, %v1451
    %v1612 = vpack.c.b16 %v1460, %v1452
    %v1613 = vpack.c.b16 %v1461, %v1453
    %v1614 = vpack.c.b16 %v1462, %v1454
    %v1615 = vpack.c.b16 %v1463, %v1455
    %v1616 = vpack.c.b16 %v1464, %v1456
    %v1617 = vpack.c.b16 %v1473, %v1465
    %v1618 = vpack.c.b16 %v1474, %v1466
    %v1619 = vpack.c.b16 %v1475, %v1467
    %v1620 = vpack.c.b16 %v1476, %v1468
    %v1621 = vpack.c.b16 %v1477, %v1469
    %v1622 = vpack.c.b16 %v1478, %v1470
    %v1623 = vpack.c.b16 %v1479, %v1471
    %v1624 = vpack.c.b16 %v1480, %v1472
    %v1625 = vpack.c.b16 %v1489, %v1481
    %v1626 = vpack.c.b16 %v1490, %v1482
    %v1627 = vpack.c.b16 %v1491, %v1483
    %v1628 = vpack.c.b16 %v1492, %v1484
    %v1629 = vpack.c.b16 %v1493, %v1485
    %v1630 = vpack.c.b16 %v1494, %v1486
    %v1631 = vpack.c.b16 %v1495, %v1487
    %v1632 = vpack.c.b16 %v1496, %v1488
    %v1633 = vpack.c.b16 %v1505, %v1497
    %v1634 = vpack.c.b16 %v1506, %v1498
    %v1635 = vpack.c.b16 %v1507, %v1499
    %v1636 = vpack.c.b16 %v1508, %v1500
    %v1637 = vpack.c.b16 %v1509, %v1501
    %v1638 = vpack.c.b16 %v1510, %v1502
    %v1639 = vpack.c.b16 %v1511, %v1503
    %v1640 = vpack.c.b16 %v1512, %v1504
    %1769 = vmatprep.subr.bf16.mxu0 %v1514
    %1770 = vmatpush1.bf16.msra.mxu0 %v1513
    %1771 = vmatprep.subr.bf16.mxu0 %v1522
    %1772 = vmatpush1.bf16.msra.mxu0 %v1521
    %1773 = vmatprep.subr.bf16.mxu0 %v1530
    %1774 = vmatpush1.bf16.msra.mxu0 %v1529
    %1775 = vmatprep.subr.bf16.mxu0 %v1538
    %1776 = vmatpush1.bf16.msra.mxu0 %v1537
    %1777 = vmatprep.subr.bf16.mxu0 %v1546
    %1778 = vmatpush1.bf16.msra.mxu0 %v1545
    %1779 = vmatprep.subr.bf16.mxu0 %v1554
    %1780 = vmatpush1.bf16.msra.mxu0 %v1553
    %1781 = vmatprep.subr.bf16.mxu0 %v1562
    %1782 = vmatpush1.bf16.msra.mxu0 %v1561
    %1783 = vmatprep.subr.bf16.mxu0 %v1570
    %1784 = vmatpush1.bf16.msra.mxu0 %v1569
    %1785 = vmatprep.subr.bf16.mxu0 %v1578
    %1786 = vmatpush1.bf16.msra.mxu0 %v1577
    %1787 = vmatprep.subr.bf16.mxu0 %v1586
    %1788 = vmatpush1.bf16.msra.mxu0 %v1585
    %1789 = vmatprep.subr.bf16.mxu0 %v1594
    %1790 = vmatpush1.bf16.msra.mxu0 %v1593
    %1791 = vmatprep.subr.bf16.mxu0 %v1602
    %1792 = vmatpush1.bf16.msra.mxu0 %v1601
    %1793 = vmatprep.subr.bf16.mxu0 %v1610
    %1794 = vmatpush1.bf16.msra.mxu0 %v1609
    %1795 = vmatprep.subr.bf16.mxu0 %v1618
    %1796 = vmatpush1.bf16.msra.mxu0 %v1617
    %1797 = vmatprep.subr.bf16.mxu0 %v1626
    %1798 = vmatpush1.bf16.msra.mxu0 %v1625
    %1799 = vmatprep.subr.bf16.mxu0 %v1634
    %1800 = vmatpush1.bf16.msra.mxu0 %v1633
    %1801 = vmatprep.mubr.bf16.mxu0 %v958
    %1802 = vmatmul.mubr.bf16.gmra.mrb[0].mxu0 %v957
    %v1803 = vpop.f32.mrb[0].mxu0
    %v1804 = vadd.f32 %v1092, %v1803
    %v1805 = vpop.f32.mrb[0].mxu0
    %v1806 = vadd.f32 %v1096, %v1805
    %v1807 = vpop.f32.mrb[0].mxu0
    %v1808 = vadd.f32 %v1092, %v1807
    %v1809 = vpop.f32.mrb[0].mxu0
    %v1810 = vadd.f32 %v1096, %v1809
    %1811 = vdwg.mxu0
    %1812 = vmatprep.subr.bf16.mxu0 %v1516
    %1813 = vmatpush1.bf16.msra.mxu0 %v1515
    %1814 = vmatprep.subr.bf16.mxu0 %v1524
    %1815 = vmatpush1.bf16.msra.mxu0 %v1523
    %1816 = vmatprep.subr.bf16.mxu0 %v1532
    %1817 = vmatpush1.bf16.msra.mxu0 %v1531
    %1818 = vmatprep.subr.bf16.mxu0 %v1540
    %1819 = vmatpush1.bf16.msra.mxu0 %v1539
    %1820 = vmatprep.subr.bf16.mxu0 %v1548
    %1821 = vmatpush1.bf16.msra.mxu0 %v1547
    %1822 = vmatprep.subr.bf16.mxu0 %v1556
    %1823 = vmatpush1.bf16.msra.mxu0 %v1555
    %1824 = vmatprep.subr.bf16.mxu0 %v1564
    %1825 = vmatpush1.bf16.msra.mxu0 %v1563
    %1826 = vmatprep.subr.bf16.mxu0 %v1572
    %1827 = vmatpush1.bf16.msra.mxu0 %v1571
    %1828 = vmatprep.subr.bf16.mxu0 %v1580
    %1829 = vmatpush1.bf16.msra.mxu0 %v1579
    %1830 = vmatprep.subr.bf16.mxu0 %v1588
    %1831 = vmatpush1.bf16.msra.mxu0 %v1587
    %1832 = vmatprep.subr.bf16.mxu0 %v1596
    %1833 = vmatpush1.bf16.msra.mxu0 %v1595
    %1834 = vmatprep.subr.bf16.mxu0 %v1604
    %1835 = vmatpush1.bf16.msra.mxu0 %v1603
    %1836 = vmatprep.subr.bf16.mxu0 %v1612
    %1837 = vmatpush1.bf16.msra.mxu0 %v1611
    %1838 = vmatprep.subr.bf16.mxu0 %v1620
    %1839 = vmatpush1.bf16.msra.mxu0 %v1619
    %1840 = vmatprep.subr.bf16.mxu0 %v1628
    %1841 = vmatpush1.bf16.msra.mxu0 %v1627
    %1842 = vmatprep.subr.bf16.mxu0 %v1636
    %1843 = vmatpush1.bf16.msra.mxu0 %v1635
    %1844 = vmatprep.mubr.bf16.mxu0 %v958
    %1845 = vmatmul.mubr.bf16.gmra.mrb[0].mxu0 %v957
    %v1846 = vpop.f32.mrb[0].mxu0
    %v1847 = vadd.f32 %v1100, %v1846
    %v1848 = vpop.f32.mrb[0].mxu0
    %v1849 = vadd.f32 %v1104, %v1848
    %v1850 = vpop.f32.mrb[0].mxu0
    %v1851 = vadd.f32 %v1100, %v1850
    %v1852 = vpop.f32.mrb[0].mxu0
    %v1853 = vadd.f32 %v1104, %v1852
    %1854 = vdwg.mxu0
    %1855 = vmatprep.subr.bf16.mxu0 %v1518
    %1856 = vmatpush1.bf16.msra.mxu0 %v1517
    %1857 = vmatprep.subr.bf16.mxu0 %v1526
    %1858 = vmatpush1.bf16.msra.mxu0 %v1525
    %1859 = vmatprep.subr.bf16.mxu0 %v1534
    %1860 = vmatpush1.bf16.msra.mxu0 %v1533
    %1861 = vmatprep.subr.bf16.mxu0 %v1542
    %1862 = vmatpush1.bf16.msra.mxu0 %v1541
    %1863 = vmatprep.subr.bf16.mxu0 %v1550
    %1864 = vmatpush1.bf16.msra.mxu0 %v1549
    %1865 = vmatprep.subr.bf16.mxu0 %v1558
    %1866 = vmatpush1.bf16.msra.mxu0 %v1557
    %1867 = vmatprep.subr.bf16.mxu0 %v1566
    %1868 = vmatpush1.bf16.msra.mxu0 %v1565
    %1869 = vmatprep.subr.bf16.mxu0 %v1574
    %1870 = vmatpush1.bf16.msra.mxu0 %v1573
    %1871 = vmatprep.subr.bf16.mxu0 %v1582
    %1872 = vmatpush1.bf16.msra.mxu0 %v1581
    %1873 = vmatprep.subr.bf16.mxu0 %v1590
    %1874 = vmatpush1.bf16.msra.mxu0 %v1589
    %1875 = vmatprep.subr.bf16.mxu0 %v1598
    %1876 = vmatpush1.bf16.msra.mxu0 %v1597
    %1877 = vmatprep.subr.bf16.mxu0 %v1606
    %1878 = vmatpush1.bf16.msra.mxu0 %v1605
    %1879 = vmatprep.subr.bf16.mxu0 %v1614
    %1880 = vmatpush1.bf16.msra.mxu0 %v1613
    %1881 = vmatprep.subr.bf16.mxu0 %v1622
    %1882 = vmatpush1.bf16.msra.mxu0 %v1621
    %1883 = vmatprep.subr.bf16.mxu0 %v1630
    %1884 = vmatpush1.bf16.msra.mxu0 %v1629
    %1885 = vmatprep.subr.bf16.mxu0 %v1638
    %1886 = vmatpush1.bf16.msra.mxu0 %v1637
    %1887 = vmatprep.mubr.bf16.mxu0 %v958
    %1888 = vmatmul.mubr.bf16.gmra.mrb[0].mxu0 %v957
    %v1889 = vpop.f32.mrb[0].mxu0
    %v1890 = vadd.f32 %v1108, %v1889
    %v1891 = vpop.f32.mrb[0].mxu0
    %v1892 = vadd.f32 %v1112, %v1891
    %v1893 = vpop.f32.mrb[0].mxu0
    %v1894 = vadd.f32 %v1108, %v1893
    %v1895 = vpop.f32.mrb[0].mxu0
    %v1896 = vadd.f32 %v1112, %v1895
    %1897 = vdwg.mxu0
    %1898 = vmatprep.subr.bf16.mxu0 %v1520
    %1899 = vmatpush1.bf16.msra.mxu0 %v1519
    %1900 = vmatprep.subr.bf16.mxu0 %v1528
    %1901 = vmatpush1.bf16.msra.mxu0 %v1527
    %1902 = vmatprep.subr.bf16.mxu0 %v1536
    %1903 = vmatpush1.bf16.msra.mxu0 %v1535
    %1904 = vmatprep.subr.bf16.mxu0 %v1544
    %1905 = vmatpush1.bf16.msra.mxu0 %v1543
    %1906 = vmatprep.subr.bf16.mxu0 %v1552
    %1907 = vmatpush1.bf16.msra.mxu0 %v1551
    %1908 = vmatprep.subr.bf16.mxu0 %v1560
    %1909 = vmatpush1.bf16.msra.mxu0 %v1559
    %1910 = vmatprep.subr.bf16.mxu0 %v1568
    %1911 = vmatpush1.bf16.msra.mxu0 %v1567
    %1912 = vmatprep.subr.bf16.mxu0 %v1576
    %1913 = vmatpush1.bf16.msra.mxu0 %v1575
    %1914 = vmatprep.subr.bf16.mxu0 %v1584
    %1915 = vmatpush1.bf16.msra.mxu0 %v1583
    %1916 = vmatprep.subr.bf16.mxu0 %v1592
    %1917 = vmatpush1.bf16.msra.mxu0 %v1591
    %1918 = vmatprep.subr.bf16.mxu0 %v1600
    %1919 = vmatpush1.bf16.msra.mxu0 %v1599
    %1920 = vmatprep.subr.bf16.mxu0 %v1608
    %1921 = vmatpush1.bf16.msra.mxu0 %v1607
    %1922 = vmatprep.subr.bf16.mxu0 %v1616
    %1923 = vmatpush1.bf16.msra.mxu0 %v1615
    %1924 = vmatprep.subr.bf16.mxu0 %v1624
    %1925 = vmatpush1.bf16.msra.mxu0 %v1623
    %1926 = vmatprep.subr.bf16.mxu0 %v1632
    %1927 = vmatpush1.bf16.msra.mxu0 %v1631
    %1928 = vmatprep.subr.bf16.mxu0 %v1640
    %1929 = vmatpush1.bf16.msra.mxu0 %v1639
    %1930 = vmatprep.mubr.bf16.mxu0 %v958
    %1931 = vmatmul.mubr.bf16.gmra.mrb[0].mxu0 %v957
    %v1932 = vpop.f32.mrb[0].mxu0
    %v1933 = vadd.f32 %v1116, %v1932
    %v1934 = vpop.f32.mrb[0].mxu0
    %v1935 = vadd.f32 %v1120, %v1934
    %v1936 = vpop.f32.mrb[0].mxu0
    %v1937 = vadd.f32 %v1116, %v1936
    %v1938 = vpop.f32.mrb[0].mxu0
    %v1939 = vadd.f32 %v1120, %v1938
    %1940 = vdwg.mxu0
    %v1941 = vtanh.pop %v1804
    %v1942 = vtanh.pop %v1806
    %v1943 = vtanh.pop %v1847
    %v1944 = vtanh.pop %v1849
    %v1945 = vtanh.pop %v1890
    %v1946 = vtanh.pop %v1892
    %v1947 = vtanh.pop %v1933
    %v1948 = vtanh.pop %v1935
    %v1949 = vtanh.pop %v1808
    %v1950 = vtanh.pop %v1810
    %v1951 = vtanh.pop %v1851
    %v1952 = vtanh.pop %v1853
    %v1953 = vtanh.pop %v1894
    %v1954 = vtanh.pop %v1896
    %v1955 = vtanh.pop %v1937
    %v1956 = vtanh.pop %v1939
    %v1957 = vpack.c.bf16 %v1949, %v1941
    %v1958 = vpack.c.bf16 %v1950, %v1942
    %v1959 = vpack.c.bf16 %v1951, %v1943
    %v1960 = vpack.c.bf16 %v1952, %v1944
    %v1961 = vpack.c.bf16 %v1953, %v1945
    %v1962 = vpack.c.bf16 %v1954, %v1946
    %v1963 = vpack.c.bf16 %v1955, %v1947
    %v1964 = vpack.c.bf16 %v1956, %v1948
    %v1973 = vunpack.c.l.b16 %v1957
    %v1974 = vunpack.c.l.b16 %v1958
    %v1975 = vunpack.c.l.b16 %v1959
    %v1976 = vunpack.c.l.b16 %v1960
    %v1977 = vunpack.c.l.b16 %v1961
    %v1978 = vunpack.c.l.b16 %v1962
    %v1979 = vunpack.c.l.b16 %v1963
    %v1980 = vunpack.c.l.b16 %v1964
    %v1981 = vunpack.c.h.b16 %v1957
    %v1982 = vunpack.c.h.b16 %v1958
    %v1983 = vunpack.c.h.b16 %v1959
    %v1984 = vunpack.c.h.b16 %v1960
    %v1985 = vunpack.c.h.b16 %v1961
    %v1986 = vunpack.c.h.b16 %v1962
    %v1987 = vunpack.c.h.b16 %v1963
    %v1988 = vunpack.c.h.b16 %v1964
    %v1989 = vpack.c.b16 %v1974, %v1973
    %v1990 = vpack.c.b16 %v1976, %v1975
    %v1991 = vpack.c.b16 %v1978, %v1977
    %v1992 = vpack.c.b16 %v1980, %v1979
    %v1993 = vpack.c.b16 %v1982, %v1981
    %v1994 = vpack.c.b16 %v1984, %v1983
    %v1995 = vpack.c.b16 %v1986, %v1985
    %v1996 = vpack.c.b16 %v1988, %v1987
    %2005 = vst [vmem:[%s7] sm:$0xff] %v1989
    %2006 = vst [vmem:[%s7 + $0x8] sm:$0xff] %v1990
    %2007 = vst [vmem:[%s7 + $0x10] sm:$0xff] %v1991
    %2008 = vst [vmem:[%s7 + $0x18] sm:$0xff] %v1992
    %2009 = vst [vmem:[%s7 + $0x20] sm:$0xff] %v1993
    %2010 = vst [vmem:[%s7 + $0x28] sm:$0xff] %v1994
    %2011 = vst [vmem:[%s7 + $0x30] sm:$0xff] %v1995
    %2012 = vst [vmem:[%s7 + $0x38] sm:$0xff] %v1996
    // Predicated region
    $region42: #{generator_forward.1} parent=1 // pred_check
      _
    $region43: #{generator_forward.1} parent=1 // pred_check_branch
      %2014 = sbr.rel (0) target = $region45
    $region44: #{generator_forward.1} parent=1 // pred_region
      _
    $region45: #{generator_forward.1} parent=1 // pred_fallthru
      _
    // Predicated region
    $region46: #{generator_forward.1} parent=1 // pred_check
      _
    $region47: #{generator_forward.1} parent=1 // pred_check_branch
      %2016 = sbr.rel (0) target = $region49
    $region48: #{generator_forward.1} parent=1 // pred_region
      _
    $region49: #{generator_forward.1} parent=1 // pred_fallthru
      _
    %2017 = vsyncpa [#allocation3], 1
    %2018 = vsyncpa [#allocation5], 1

</llo_original>
